<compile_context>
chip_gen: v5e
topology: v5e:2x2
jax: 0.10.0
libtpu: 0.0.40
codegen_flags: <defaults>
</compile_context>

<pallas_src>
import functools
import math

import jax
import jax.numpy as jnp
from jax.experimental import pallas as pl
from jax.experimental.pallas import tpu as pltpu


# ----------------------------------------------------------------------------
# Layer-streamed encoder kernel.
#   grid = (B, L): outer axis = batch element ("parallel" -> megacore),
#                  inner axis = encoder layer ("arbitrary", weights streamed).
# ----------------------------------------------------------------------------
def _encoder_layer_kernel(emb_ref, mask_ref, eg_ref, eb_ref,
                          wqkv_ref, bqkv_ref, wo_ref, bo_ref,
                          ln1g_ref, ln1b_ref, w1_ref, b1_ref,
                          w2_ref, b2_ref, ln2g_ref, ln2b_ref,
                          out_ref, x_ref, *, num_heads, head_dim, eps):
    S, H = x_ref.shape
    NH, DH = num_heads, head_dim
    layer = pl.program_id(1)
    n_layers = pl.num_programs(1)
    scale = 1.0 / math.sqrt(DH)
    bf16 = jnp.bfloat16
    f32 = jnp.float32

    def ln(v, g, b):
        mu = jnp.mean(v, axis=-1, keepdims=True)
        var = jnp.mean(jnp.square(v - mu), axis=-1, keepdims=True)
        return (v - mu) * jax.lax.rsqrt(var + eps) * g + b

    def mm(a_f32, w_bf16):
        # bf16 MXU inputs, f32 accumulation; elementwise math stays f32.
        return jnp.dot(a_f32.astype(bf16), w_bf16, preferred_element_type=f32)

    # Layer 0: initialize the carried activation from the embeddings (+ LN).
    @pl.when(layer == 0)
    def _():
        x_ref[...] = ln(emb_ref[0], eg_ref[...], eb_ref[...])

    x = x_ref[...]                     # [S, H] f32, carried across layers
    mask = mask_ref[0]                 # [1, S] additive attention bias

    # Fused Q|K|V projection: [S, H] @ [H, 3H] -> [S, 3H].
    qkv = mm(x, wqkv_ref[0]) + bqkv_ref[0]
    # One K transpose per layer (single XLU pass); per-head score matmuls
    # below are then canonical [S,DH] @ [DH,S] dots with no implicit transposes.
    kT = jnp.transpose(qkv[:, H:2 * H])                 # [H, S] f32

    # ---- interior layers: full transformer block, result carried in x_ref --
    @pl.when(layer < n_layers - 1)
    def _interior():
        ctx_heads = []
        for h in range(NH):                             # static unroll
            o = h * DH
            qh = (qkv[:, o:o + DH] * scale).astype(bf16)          # [S, DH]
            kh = kT[o:o + DH, :].astype(bf16)                     # [DH, S]
            vh = qkv[:, 2 * H + o:2 * H + o + DH].astype(bf16)    # [S, DH]

            s = jnp.dot(qh, kh, preferred_element_type=f32) + mask  # [S, S]
            s = s - jnp.max(s, axis=-1, keepdims=True)
            e = jnp.exp(s.astype(bf16)).astype(f32)     # bf16 EUP exp (v6e/v7x)
            p = e * pl.reciprocal(jnp.sum(e, axis=-1, keepdims=True),
                                  approx=True)
            ctx_heads.append(jnp.dot(p.astype(bf16), vh,
                                     preferred_element_type=f32))   # [S, DH]
        # Lane concat + one big out-projection matmul keeps the MXU contraction
        # at H (256-lane friendly at real sizes) instead of NH small DH-dots.
        ctx = jnp.concatenate(ctx_heads, axis=-1)       # [S, H]

        # Output projection + residual + LN1.
        x1 = ln(x + mm(ctx, wo_ref[0]) + bo_ref[0], ln1g_ref[0], ln1b_ref[0])

        # FFN with tanh-approx GELU (tanh on the bf16 EUP path).
        # TODO(synk): HuggingFace BERT defaults to erf-based GELU.
        hmid = mm(x1, w1_ref[0]) + b1_ref[0]
        c = math.sqrt(2.0 / math.pi)
        inner = c * (hmid + 0.044715 * hmid * hmid * hmid)
        t = jnp.tanh(inner.astype(bf16)).astype(f32)
        gelu = 0.5 * hmid * (1.0 + t)
        x_ref[...] = ln(x1 + mm(gelu, w2_ref[0]) + b2_ref[0],
                        ln2g_ref[0], ln2b_ref[0])

    # ---- last layer: the module only needs the head-summed CLS-row of the
    #      attention probs, so skip ctx / out-proj / FFN entirely and compute
    #      that single row with f32 scores + exact softmax (these values ARE
    #      the returned tensor).
    @pl.when(layer == n_layers - 1)
    def _last():
        cls_row = jnp.zeros((1, S), f32)
        for h in range(NH):                             # static unroll, tiny
            o = h * DH
            q_cls = qkv[0:1, o:o + DH]                  # [1, DH] f32
            s = jnp.dot(q_cls, kT[o:o + DH, :],
                        preferred_element_type=f32) * scale + mask   # [1, S]
            s = s - jnp.max(s, axis=-1, keepdims=True)
            e = jnp.exp(s)
            cls_row = cls_row + e / jnp.sum(e, axis=-1, keepdims=True)
        # TODO(synk): pad S to a multiple of 128 for an unmasked vst if this
        # output is ever widened.
        out_ref[0] = cls_row.astype(out_ref.dtype)      # lane-dense [1, S]


def encoder_cls(emb, mask_bias, packed, cfg):
    """Runs the whole BERT encoder + CLS-weight reduction in one pallas_call.

    emb:       [B, S, H]  word + position + type embeddings (pre-LN)
    mask_bias: [B, 1, S]  additive attention bias (-10000 on padding)
    returns    [B, S]     head-summed last-layer attention, CLS query row
    """
    B, S, H = emb.shape
    L, NH, DH, I = cfg["layers"], cfg["heads"], cfg["head_dim"], cfg["intermediate"]

    kernel = functools.partial(_encoder_layer_kernel, num_heads=NH,
                               head_dim=DH, eps=1e-12)

    # Explicit VMEM budget: one layer's weight slab (double-buffered) +
    # activations / temporaries, clamped to a safe range for all generations.
    w_layer = 2 * (H * 3 * H + H * H + H * I + I * H)       # bf16 weights
    b_layer = 4 * (3 * H + H + I + H + 4 * H)               # f32 biases + LN
    act = 4 * (6 * S * H + S * 3 * H + 2 * S * S + S * I)   # rough temporaries
    vmem_limit = int(min(110 << 20,
                         max(32 << 20,
                             2 * (w_layer + b_layer) + act + (8 * S * H)
                             + (2 << 20))))

    def wspec(shape):
        return pl.BlockSpec(shape, lambda b, l: (l,) + (0,) * (len(shape) - 1))

    out = pl.pallas_call(
        kernel,
        out_shape=jax.ShapeDtypeStruct((B, 1, S), jnp.float32),
        grid=(B, L),
        in_specs=[
            pl.BlockSpec((1, S, H), lambda b, l: (b, 0, 0)),     # embeddings
            pl.BlockSpec((1, 1, S), lambda b, l: (b, 0, 0)),     # mask bias
            pl.BlockSpec((1, H), lambda b, l: (0, 0)),           # emb LN gamma
            pl.BlockSpec((1, H), lambda b, l: (0, 0)),           # emb LN beta
            wspec((1, H, 3 * H)), wspec((1, 1, 3 * H)),          # wqkv, bqkv
            wspec((1, H, H)), wspec((1, 1, H)),                  # wo, bo
            wspec((1, 1, H)), wspec((1, 1, H)),                  # ln1 g, b
            wspec((1, H, I)), wspec((1, 1, I)),                  # w1, b1
            wspec((1, I, H)), wspec((1, 1, H)),                  # w2, b2
            wspec((1, 1, H)), wspec((1, 1, H)),                  # ln2 g, b
        ],
        out_specs=pl.BlockSpec((1, 1, S), lambda b, l: (b, 0, 0)),
        scratch_shapes=[pltpu.VMEM((S, H), jnp.float32)],        # carried x
        compiler_params=pltpu.CompilerParams(
            dimension_semantics=("parallel", "arbitrary"),
            vmem_limit_bytes=vmem_limit),
    )(emb, mask_bias,
      packed["emb_ln_g"], packed["emb_ln_b"],
      packed["wqkv"], packed["bqkv"], packed["wo"], packed["bo"],
      packed["ln1_g"], packed["ln1_b"], packed["w1"], packed["b1"],
      packed["w2"], packed["b2"], packed["ln2_g"], packed["ln2_b"])
    return out[:, 0, :]                                          # [B, S]


# ----------------------------------------------------------------------------
# One-time weight packing (done at param-load time, NOT per forward call):
# stack per-layer params into [L, ...] slabs, pre-cast matmul weights to bf16.
# ----------------------------------------------------------------------------
def prepare_weights(params, cfg):
    bf16 = jnp.bfloat16
    lyr = params["layers"]
    packed = {
        "word_emb": params["word_emb"],
        "pos_emb": params["pos_emb"],
        "type_emb": params["type_emb"],
        "emb_ln_g": params["emb_ln_g"][None, :],
        "emb_ln_b": params["emb_ln_b"][None, :],
        "wqkv": jnp.stack([jnp.concatenate([p["wq"], p["wk"], p["wv"]], axis=1)
                           for p in lyr]).astype(bf16),          # [L, H, 3H]
        "bqkv": jnp.stack([jnp.concatenate([p["bq"], p["bk"], p["bv"]])[None, :]
                           for p in lyr]),                       # [L, 1, 3H]
        "wo": jnp.stack([p["wo"] for p in lyr]).astype(bf16),    # [L, H, H]
        "bo": jnp.stack([p["bo"][None, :] for p in lyr]),
        "ln1_g": jnp.stack([p["ln1_g"][None, :] for p in lyr]),
        "ln1_b": jnp.stack([p["ln1_b"][None, :] for p in lyr]),
        "w1": jnp.stack([p["w1"] for p in lyr]).astype(bf16),    # [L, H, I]
        "b1": jnp.stack([p["b1"][None, :] for p in lyr]),
        "w2": jnp.stack([p["w2"] for p in lyr]).astype(bf16),    # [L, I, H]
        "b2": jnp.stack([p["b2"][None, :] for p in lyr]),
        "ln2_g": jnp.stack([p["ln2_g"][None, :] for p in lyr]),
        "ln2_b": jnp.stack([p["ln2_b"][None, :] for p in lyr]),
    }
    return packed


# ----------------------------------------------------------------------------
# Tiny synthetic BERT config / params (plain-JAX glue)
# ----------------------------------------------------------------------------
CFG = dict(vocab=100, type_vocab=2, max_pos=32, hidden=32, heads=4,
           head_dim=8, intermediate=64, layers=2)


def init_params(key, cfg):
    H, I = cfg["hidden"], cfg["intermediate"]
    ks = iter(jax.random.split(key, 64))
    w = lambda shape: 0.02 * jax.random.normal(next(ks), shape, jnp.float32)
    p = {
        "word_emb": w((cfg["vocab"], H)),
        "pos_emb": w((cfg["max_pos"], H)),
        "type_emb": w((cfg["type_vocab"], H)),
        "emb_ln_g": jnp.ones((H,), jnp.float32),
        "emb_ln_b": jnp.zeros((H,), jnp.float32),
        "layers": [],
    }
    for _ in range(cfg["layers"]):
        p["layers"].append({
            "wq": w((H, H)), "bq": jnp.zeros((H,), jnp.float32),
            "wk": w((H, H)), "bk": jnp.zeros((H,), jnp.float32),
            "wv": w((H, H)), "bv": jnp.zeros((H,), jnp.float32),
            "wo": w((H, H)), "bo": jnp.zeros((H,), jnp.float32),
            "ln1_g": jnp.ones((H,), jnp.float32), "ln1_b": jnp.zeros((H,), jnp.float32),
            "w1": w((H, I)), "b1": jnp.zeros((I,), jnp.float32),
            "w2": w((I, H)), "b2": jnp.zeros((H,), jnp.float32),
            "ln2_g": jnp.ones((H,), jnp.float32), "ln2_b": jnp.zeros((H,), jnp.float32),
        })
    return p


def _embed(packed, input_ids, token_type_ids):
    S = input_ids.shape[1]
    return (jnp.take(packed["word_emb"], input_ids, axis=0)
            + packed["pos_emb"][None, :S, :]
            + jnp.take(packed["type_emb"], token_type_ids, axis=0))   # [B, S, H]


def bert_for_cls_weight(packed, batch_data, cfg):
    """JAX/Pallas equivalent of BertForCLSWeight.forward."""
    input_ids = batch_data["input_ids"]
    token_type_ids = batch_data["token_type_ids"]
    attention_mask = batch_data["attention_mask"]
    # .item() in the PyTorch module -> static Python ints here; a length change
    # only retraces the cheap wrapper slice, not the Pallas kernel.
    qry_len = int(batch_data["qry_length"][0])
    psg_len = int(batch_data["psg_length"][0])

    emb = _embed(packed, input_ids, token_type_ids)
    mask_bias = ((1.0 - attention_mask.astype(jnp.float32)) * -10000.0)[:, None, :]

    cls_full = encoder_cls(emb, mask_bias, packed, cfg)       # [B, S] (Pallas)
    start = 1 + qry_len + 1
    return cls_full[:, start:start + psg_len]                 # [B, psg_len]


# ----------------------------------------------------------------------------
# Pure-JAX f32 reference (sanity check only)
# ----------------------------------------------------------------------------
def _reference_cls_weight(params, emb, mask_bias, cfg, qry_len, psg_len):
    B, S, H = emb.shape
    NH, DH = cfg["heads"], cfg["head_dim"]
    eps = 1e-12

    def ln(v, g, b):
        mu = jnp.mean(v, axis=-1, keepdims=True)
        var = jnp.mean(jnp.square(v - mu), axis=-1, keepdims=True)
        return (v - mu) * jax.lax.rsqrt(var + eps) * g + b

    x = ln(emb, params["emb_ln_g"], params["emb_ln_b"])
    probs_last = None
    for p in params["layers"]:
        q = (x @ p["wq"] + p["bq"]).reshape(B, S, NH, DH).transpose(0, 2, 1, 3)
        k = (x @ p["wk"] + p["bk"]).reshape(B, S, NH, DH).transpose(0, 2, 1, 3)
        v = (x @ p["wv"] + p["bv"]).reshape(B, S, NH, DH).transpose(0, 2, 1, 3)
        s = jnp.einsum("bhqd,bhkd->bhqk", q, k) / math.sqrt(DH)
        s = s + mask_bias[:, :, None, :]
        s = s - jnp.max(s, axis=-1, keepdims=True)
        e = jnp.exp(s)
        probs = e / jnp.sum(e, axis=-1, keepdims=True)
        ctx = jnp.einsum("bhqk,bhkd->bhqd", probs, v).transpose(0, 2, 1, 3).reshape(B, S, H)
        x1 = ln(x + ctx @ p["wo"] + p["bo"], p["ln1_g"], p["ln1_b"])
        h = x1 @ p["w1"] + p["b1"]
        c = math.sqrt(2.0 / math.pi)
        h = 0.5 * h * (1.0 + jnp.tanh(c * (h + 0.044715 * h * h * h)))
        x = ln(x1 + h @ p["w2"] + p["b2"], p["ln2_g"], p["ln2_b"])
        probs_last = probs
    summed = jnp.sum(probs_last, axis=1)                      # [B, S, S]
    start = 1 + qry_len + 1
    return summed[:, 0, start:start + psg_len]


# ----------------------------------------------------------------------------
if __name__ == "__main__":
    B, S = 2, 16
    qry_len, psg_len = 4, 8          # 1 + qry_len + 1 + psg_len = 14 <= S

    key = jax.random.PRNGKey(0)
    k_param, k_ids = jax.random.split(key)
    params = init_params(k_param, CFG)
    packed = prepare_weights(params, CFG)     # one-time weight packing

    input_ids = jax.random.randint(k_ids, (B, S), 0, CFG["vocab"], jnp.int32)
    token_type_ids = jnp.concatenate(
        [jnp.zeros((B, 1 + qry_len + 1), jnp.int32),
         jnp.ones((B, S - (1 + qry_len + 1)), jnp.int32)], axis=1)
    attention_mask = jnp.ones((B, S), jnp.int32)
    attention_mask = attention_mask.at[1, S - 2:].set(0)   # padding in sample 1

    batch_data = {
        "input_ids": input_ids,
        "token_type_ids": token_type_ids,
        "attention_mask": attention_mask,
        "qry_length": [qry_len],
        "psg_length": [psg_len],
    }

    out = bert_for_cls_weight(packed, batch_data, CFG)
    out = jax.block_until_ready(out)

    assert out.shape == (B, psg_len), out.shape
    assert bool(jnp.all(jnp.isfinite(out)))

    # Sanity check against a pure-JAX f32 reference (kernel uses bf16 MXU
    # inputs + bf16 EUP transcendentals in interior layers).
    emb = _embed(packed, input_ids, token_type_ids)
    mask_bias = ((1.0 - attention_mask.astype(jnp.float32)) * -10000.0)[:, None, :]
    ref = _reference_cls_weight(params, emb, mask_bias, CFG, qry_len, psg_len)
    max_err = float(jnp.max(jnp.abs(out - ref)))
    assert max_err < 5e-2, f"max abs err vs reference: {max_err}"

    print("KERNEL_OK")
</pallas_src>

<mosaic_0001>
module attributes {stable_mosaic.version = 11 : i64} {
  func.func @_encoder_layer_kernel(%arg0: i32, %arg1: i32, %arg2: memref<1x16x32xf32, #tpu.memory_space<vmem>>, %arg3: memref<1x1x16xf32, #tpu.memory_space<vmem>>, %arg4: memref<1x32xf32, #tpu.memory_space<vmem>>, %arg5: memref<1x32xf32, #tpu.memory_space<vmem>>, %arg6: memref<1x32x96xbf16, #tpu.memory_space<vmem>>, %arg7: memref<1x1x96xf32, #tpu.memory_space<vmem>>, %arg8: memref<1x32x32xbf16, #tpu.memory_space<vmem>>, %arg9: memref<1x1x32xf32, #tpu.memory_space<vmem>>, %arg10: memref<1x1x32xf32, #tpu.memory_space<vmem>>, %arg11: memref<1x1x32xf32, #tpu.memory_space<vmem>>, %arg12: memref<1x32x64xbf16, #tpu.memory_space<vmem>>, %arg13: memref<1x1x64xf32, #tpu.memory_space<vmem>>, %arg14: memref<1x64x32xbf16, #tpu.memory_space<vmem>>, %arg15: memref<1x1x32xf32, #tpu.memory_space<vmem>>, %arg16: memref<1x1x32xf32, #tpu.memory_space<vmem>>, %arg17: memref<1x1x32xf32, #tpu.memory_space<vmem>>, %arg18: memref<1x1x16xf32, #tpu.memory_space<vmem>>, %arg19: memref<16x32xf32, #tpu.memory_space<vmem>>) attributes {dimension_semantics = [#tpu.dimension_semantics<parallel>, #tpu.dimension_semantics<arbitrary>], iteration_bounds = array<i64: 2, 2>, scalar_prefetch = 0 : i64, scratch_operands = 1 : i64, tpu.core_type = #tpu.core_type<tc>, window_params = [{transform_indices = @transform_0, window_bounds = array<i64: 1, 16, 32>}, {transform_indices = @transform_1, window_bounds = array<i64: 1, 1, 16>}, {pipeline_mode = #tpu.pipeline_mode<synchronous>, transform_indices = @transform_2, window_bounds = array<i64: 1, 32>}, {pipeline_mode = #tpu.pipeline_mode<synchronous>, transform_indices = @transform_3, window_bounds = array<i64: 1, 32>}, {transform_indices = @transform_4, window_bounds = array<i64: 1, 32, 96>}, {transform_indices = @transform_5, window_bounds = array<i64: 1, 1, 96>}, {transform_indices = @transform_6, window_bounds = array<i64: 1, 32, 32>}, {transform_indices = @transform_7, window_bounds = array<i64: 1, 1, 32>}, {transform_indices = @transform_8, window_bounds = array<i64: 1, 1, 32>}, {transform_indices = @transform_9, window_bounds = array<i64: 1, 1, 32>}, {transform_indices = @transform_10, window_bounds = array<i64: 1, 32, 64>}, {transform_indices = @transform_11, window_bounds = array<i64: 1, 1, 64>}, {transform_indices = @transform_12, window_bounds = array<i64: 1, 64, 32>}, {transform_indices = @transform_13, window_bounds = array<i64: 1, 1, 32>}, {transform_indices = @transform_14, window_bounds = array<i64: 1, 1, 32>}, {transform_indices = @transform_15, window_bounds = array<i64: 1, 1, 32>}, {transform_indices = @transform_16, window_bounds = array<i64: 1, 1, 16>}]} {
    %c0_i32 = arith.constant 0 : i32
    %0 = arith.cmpi eq, %arg1, %c0_i32 : i32
    %1 = arith.extui %0 : i1 to i32
    %c0_i32_0 = arith.constant 0 : i32
    %2 = arith.cmpi ne, %1, %c0_i32_0 : i32
    scf.if %2 {
      %c0_14 = arith.constant 0 : index
      %c0_15 = arith.constant 0 : index
      %c0_16 = arith.constant 0 : index
      %22 = vector.load %arg2[%c0_14, %c0_15, %c0_16] : memref<1x16x32xf32, #tpu.memory_space<vmem>>, vector<1x16x32xf32>
      %23 = vector.shape_cast %22 : vector<1x16x32xf32> to vector<16x32xf32>
      %c0_17 = arith.constant 0 : index
      %c0_18 = arith.constant 0 : index
      %24 = vector.load %arg4[%c0_17, %c0_18] : memref<1x32xf32, #tpu.memory_space<vmem>>, vector<1x32xf32>
      %c0_19 = arith.constant 0 : index
      %c0_20 = arith.constant 0 : index
      %25 = vector.load %arg5[%c0_19, %c0_20] : memref<1x32xf32, #tpu.memory_space<vmem>>, vector<1x32xf32>
      %cst_21 = arith.constant dense<0.000000e+00> : vector<16xf32>
      %26 = vector.multi_reduction <add>, %23, %cst_21 [1] : vector<16x32xf32> to vector<16xf32>
      %27 = vector.shape_cast %26 : vector<16xf32> to vector<16x1xf32>
      %cst_22 = arith.constant 3.200000e+01 : f32
      %28 = vector.broadcast %cst_22 : f32 to vector<16x1xf32>
      %29 = arith.divf %27, %28 : vector<16x1xf32>
      %30 = vector.broadcast %29 : vector<16x1xf32> to vector<16x32xf32>
      %31 = arith.subf %23, %30 : vector<16x32xf32>
      %32 = arith.mulf %31, %31 : vector<16x32xf32>
      %cst_23 = arith.constant dense<0.000000e+00> : vector<16xf32>
      %33 = vector.multi_reduction <add>, %32, %cst_23 [1] : vector<16x32xf32> to vector<16xf32>
      %34 = vector.shape_cast %33 : vector<16xf32> to vector<16x1xf32>
      %cst_24 = arith.constant 3.200000e+01 : f32
      %35 = vector.broadcast %cst_24 : f32 to vector<16x1xf32>
      %36 = arith.divf %34, %35 : vector<16x1xf32>
      %37 = vector.broadcast %29 : vector<16x1xf32> to vector<16x32xf32>
      %38 = arith.subf %23, %37 : vector<16x32xf32>
      %cst_25 = arith.constant 9.99999996E-13 : f32
      %39 = vector.broadcast %cst_25 : f32 to vector<16x1xf32>
      %40 = arith.addf %36, %39 : vector<16x1xf32>
      %41 = math.rsqrt %40 : vector<16x1xf32>
      %42 = vector.broadcast %41 : vector<16x1xf32> to vector<16x32xf32>
      %43 = arith.mulf %38, %42 : vector<16x32xf32>
      %44 = vector.broadcast %24 : vector<1x32xf32> to vector<16x32xf32>
      %45 = arith.mulf %43, %44 : vector<16x32xf32>
      %46 = vector.broadcast %25 : vector<1x32xf32> to vector<16x32xf32>
      %47 = arith.addf %45, %46 : vector<16x32xf32>
      %c0_26 = arith.constant 0 : index
      %c0_27 = arith.constant 0 : index
      %48 = vector.load %arg19[%c0_26, %c0_27] : memref<16x32xf32, #tpu.memory_space<vmem>>, vector<16x32xf32>
      tpu.vector_store %arg19[%c0_26, %c0_27], %47 {strides = array<i32>} : memref<16x32xf32, #tpu.memory_space<vmem>>, vector<16x32xf32>,
    } else {
    }
    %c0 = arith.constant 0 : index
    %c0_1 = arith.constant 0 : index
    %3 = vector.load %arg19[%c0, %c0_1] : memref<16x32xf32, #tpu.memory_space<vmem>>, vector<16x32xf32>
    %c0_2 = arith.constant 0 : index
    %c0_3 = arith.constant 0 : index
    %c0_4 = arith.constant 0 : index
    %4 = vector.load %arg3[%c0_2, %c0_3, %c0_4] : memref<1x1x16xf32, #tpu.memory_space<vmem>>, vector<1x1x16xf32>
    %5 = vector.shape_cast %4 : vector<1x1x16xf32> to vector<1x16xf32>
    %c0_5 = arith.constant 0 : index
    %c0_6 = arith.constant 0 : index
    %c0_7 = arith.constant 0 : index
    %6 = vector.load %arg6[%c0_5, %c0_6, %c0_7] : memref<1x32x96xbf16, #tpu.memory_space<vmem>>, vector<1x32x96xbf16>
    %7 = vector.shape_cast %6 : vector<1x32x96xbf16> to vector<32x96xbf16>
    %8 = arith.truncf %3 : vector<16x32xf32> to vector<16x32xbf16>
    %cst = arith.constant dense<0.000000e+00> : vector<16x96xf32>
    %9 = tpu.matmul %8, %7, %cst {dimension_numbers = #tpu.dot_dimension_numbers<[1], [0], [0], [1], [0, 0, 1, 1], [], []>} : vector<16x32xbf16>, vector<32x96xbf16>, vector<16x96xf32> -> vector<16x96xf32>
    %c0_8 = arith.constant 0 : index
    %c0_9 = arith.constant 0 : index
    %c0_10 = arith.constant 0 : index
    %10 = vector.load %arg7[%c0_8, %c0_9, %c0_10] : memref<1x1x96xf32, #tpu.memory_space<vmem>>, vector<1x1x96xf32>
    %11 = vector.shape_cast %10 : vector<1x1x96xf32> to vector<1x96xf32>
    %12 = vector.broadcast %11 : vector<1x96xf32> to vector<16x96xf32>
    %13 = arith.addf %9, %12 : vector<16x96xf32>
    %14 = vector.extract_strided_slice %13 {offsets = [0, 32], sizes = [16, 32], strides = [1, 1]} : vector<16x96xf32> to vector<16x32xf32>
    %15 = tpu.transpose %14, [1, 0] : vector<16x32xf32> -> vector<32x16xf32>
    %c1_i32 = arith.constant 1 : i32
    %16 = arith.cmpi slt, %arg1, %c1_i32 : i32
    %17 = arith.extui %16 : i1 to i32
    %c0_i32_11 = arith.constant 0 : i32
    %18 = arith.cmpi ne, %17, %c0_i32_11 : i32
    scf.if %18 {
      %22 = vector.extract_strided_slice %13 {offsets = [0, 0], sizes = [16, 8], strides = [1, 1]} : vector<16x96xf32> to vector<16x8xf32>
      %cst_14 = arith.constant 0.353553385 : f32
      %23 = vector.broadcast %cst_14 : f32 to vector<16x8xf32>
      %24 = arith.mulf %22, %23 : vector<16x8xf32>
      %25 = arith.truncf %24 : vector<16x8xf32> to vector<16x8xbf16>
      %26 = vector.extract_strided_slice %15 {offsets = [0, 0], sizes = [8, 16], strides = [1, 1]} : vector<32x16xf32> to vector<8x16xf32>
      %27 = arith.truncf %26 : vector<8x16xf32> to vector<8x16xbf16>
      %28 = vector.extract_strided_slice %13 {offsets = [0, 64], sizes = [16, 8], strides = [1, 1]} : vector<16x96xf32> to vector<16x8xf32>
      %29 = arith.truncf %28 : vector<16x8xf32> to vector<16x8xbf16>
      %cst_15 = arith.constant dense<0.000000e+00> : vector<16x16xf32>
      %30 = tpu.matmul %25, %27, %cst_15 {dimension_numbers = #tpu.dot_dimension_numbers<[1], [0], [0], [1], [0, 0, 1, 1], [], []>} : vector<16x8xbf16>, vector<8x16xbf16>, vector<16x16xf32> -> vector<16x16xf32>
      %31 = vector.broadcast %5 : vector<1x16xf32> to vector<16x16xf32>
      %32 = arith.addf %30, %31 : vector<16x16xf32>
      %cst_16 = arith.constant dense<0xFF800000> : vector<16xf32>
      %33 = vector.multi_reduction <maximumf>, %32, %cst_16 [1] : vector<16x16xf32> to vector<16xf32>
      %34 = vector.shape_cast %33 : vector<16xf32> to vector<16x1xf32>
      %35 = vector.broadcast %34 : vector<16x1xf32> to vector<16x16xf32>
      %36 = arith.subf %32, %35 : vector<16x16xf32>
      %37 = arith.truncf %36 : vector<16x16xf32> to vector<16x16xbf16>
      %38 = math.exp %37 : vector<16x16xbf16>
      %39 = arith.extf %38 : vector<16x16xbf16> to vector<16x16xf32>
      %cst_17 = arith.constant dense<0.000000e+00> : vector<16xf32>
      %40 = vector.multi_reduction <add>, %39, %cst_17 [1] : vector<16x16xf32> to vector<16xf32>
      %41 = vector.shape_cast %40 : vector<16xf32> to vector<16x1xf32>
      %42 = tpu.reciprocal %41 {approx = true} : vector<16x1xf32> -> vector<16x1xf32>
      %43 = vector.broadcast %42 : vector<16x1xf32> to vector<16x16xf32>
      %44 = arith.mulf %39, %43 : vector<16x16xf32>
      %45 = arith.truncf %44 : vector<16x16xf32> to vector<16x16xbf16>
      %cst_18 = arith.constant dense<0.000000e+00> : vector<16x8xf32>
      %46 = tpu.matmul %45, %29, %cst_18 {dimension_numbers = #tpu.dot_dimension_numbers<[1], [0], [0], [1], [0, 0, 1, 1], [], []>} : vector<16x16xbf16>, vector<16x8xbf16>, vector<16x8xf32> -> vector<16x8xf32>
      %47 = vector.extract_strided_slice %13 {offsets = [0, 8], sizes = [16, 8], strides = [1, 1]} : vector<16x96xf32> to vector<16x8xf32>
      %cst_19 = arith.constant 0.353553385 : f32
      %48 = vector.broadcast %cst_19 : f32 to vector<16x8xf32>
      %49 = arith.mulf %47, %48 : vector<16x8xf32>
      %50 = arith.truncf %49 : vector<16x8xf32> to vector<16x8xbf16>
      %51 = vector.extract_strided_slice %15 {offsets = [8, 0], sizes = [8, 16], strides = [1, 1]} : vector<32x16xf32> to vector<8x16xf32>
      %52 = arith.truncf %51 : vector<8x16xf32> to vector<8x16xbf16>
      %53 = vector.extract_strided_slice %13 {offsets = [0, 72], sizes = [16, 8], strides = [1, 1]} : vector<16x96xf32> to vector<16x8xf32>
      %54 = arith.truncf %53 : vector<16x8xf32> to vector<16x8xbf16>
      %cst_20 = arith.constant dense<0.000000e+00> : vector<16x16xf32>
      %55 = tpu.matmul %50, %52, %cst_20 {dimension_numbers = #tpu.dot_dimension_numbers<[1], [0], [0], [1], [0, 0, 1, 1], [], []>} : vector<16x8xbf16>, vector<8x16xbf16>, vector<16x16xf32> -> vector<16x16xf32>
      %56 = vector.broadcast %5 : vector<1x16xf32> to vector<16x16xf32>
      %57 = arith.addf %55, %56 : vector<16x16xf32>
      %cst_21 = arith.constant dense<0xFF800000> : vector<16xf32>
      %58 = vector.multi_reduction <maximumf>, %57, %cst_21 [1] : vector<16x16xf32> to vector<16xf32>
      %59 = vector.shape_cast %58 : vector<16xf32> to vector<16x1xf32>
      %60 = vector.broadcast %59 : vector<16x1xf32> to vector<16x16xf32>
      %61 = arith.subf %57, %60 : vector<16x16xf32>
      %62 = arith.truncf %61 : vector<16x16xf32> to vector<16x16xbf16>
      %63 = math.exp %62 : vector<16x16xbf16>
      %64 = arith.extf %63 : vector<16x16xbf16> to vector<16x16xf32>
      %cst_22 = arith.constant dense<0.000000e+00> : vector<16xf32>
      %65 = vector.multi_reduction <add>, %64, %cst_22 [1] : vector<16x16xf32> to vector<16xf32>
      %66 = vector.shape_cast %65 : vector<16xf32> to vector<16x1xf32>
      %67 = tpu.reciprocal %66 {approx = true} : vector<16x1xf32> -> vector<16x1xf32>
      %68 = vector.broadcast %67 : vector<16x1xf32> to vector<16x16xf32>
      %69 = arith.mulf %64, %68 : vector<16x16xf32>
      %70 = arith.truncf %69 : vector<16x16xf32> to vector<16x16xbf16>
      %cst_23 = arith.constant dense<0.000000e+00> : vector<16x8xf32>
      %71 = tpu.matmul %70, %54, %cst_23 {dimension_numbers = #tpu.dot_dimension_numbers<[1], [0], [0], [1], [0, 0, 1, 1], [], []>} : vector<16x16xbf16>, vector<16x8xbf16>, vector<16x8xf32> -> vector<16x8xf32>
      %72 = vector.extract_strided_slice %13 {offsets = [0, 16], sizes = [16, 8], strides = [1, 1]} : vector<16x96xf32> to vector<16x8xf32>
      %cst_24 = arith.constant 0.353553385 : f32
      %73 = vector.broadcast %cst_24 : f32 to vector<16x8xf32>
      %74 = arith.mulf %72, %73 : vector<16x8xf32>
      %75 = arith.truncf %74 : vector<16x8xf32> to vector<16x8xbf16>
      %76 = vector.extract_strided_slice %15 {offsets = [16, 0], sizes = [8, 16], strides = [1, 1]} : vector<32x16xf32> to vector<8x16xf32>
      %77 = arith.truncf %76 : vector<8x16xf32> to vector<8x16xbf16>
      %78 = vector.extract_strided_slice %13 {offsets = [0, 80], sizes = [16, 8], strides = [1, 1]} : vector<16x96xf32> to vector<16x8xf32>
      %79 = arith.truncf %78 : vector<16x8xf32> to vector<16x8xbf16>
      %cst_25 = arith.constant dense<0.000000e+00> : vector<16x16xf32>
      %80 = tpu.matmul %75, %77, %cst_25 {dimension_numbers = #tpu.dot_dimension_numbers<[1], [0], [0], [1], [0, 0, 1, 1], [], []>} : vector<16x8xbf16>, vector<8x16xbf16>, vector<16x16xf32> -> vector<16x16xf32>
      %81 = vector.broadcast %5 : vector<1x16xf32> to vector<16x16xf32>
      %82 = arith.addf %80, %81 : vector<16x16xf32>
      %cst_26 = arith.constant dense<0xFF800000> : vector<16xf32>
      %83 = vector.multi_reduction <maximumf>, %82, %cst_26 [1] : vector<16x16xf32> to vector<16xf32>
      %84 = vector.shape_cast %83 : vector<16xf32> to vector<16x1xf32>
      %85 = vector.broadcast %84 : vector<16x1xf32> to vector<16x16xf32>
      %86 = arith.subf %82, %85 : vector<16x16xf32>
      %87 = arith.truncf %86 : vector<16x16xf32> to vector<16x16xbf16>
      %88 = math.exp %87 : vector<16x16xbf16>
      %89 = arith.extf %88 : vector<16x16xbf16> to vector<16x16xf32>
      %cst_27 = arith.constant dense<0.000000e+00> : vector<16xf32>
      %90 = vector.multi_reduction <add>, %89, %cst_27 [1] : vector<16x16xf32> to vector<16xf32>
      %91 = vector.shape_cast %90 : vector<16xf32> to vector<16x1xf32>
      %92 = tpu.reciprocal %91 {approx = true} : vector<16x1xf32> -> vector<16x1xf32>
      %93 = vector.broadcast %92 : vector<16x1xf32> to vector<16x16xf32>
      %94 = arith.mulf %89, %93 : vector<16x16xf32>
      %95 = arith.truncf %94 : vector<16x16xf32> to vector<16x16xbf16>
      %cst_28 = arith.constant dense<0.000000e+00> : vector<16x8xf32>
      %96 = tpu.matmul %95, %79, %cst_28 {dimension_numbers = #tpu.dot_dimension_numbers<[1], [0], [0], [1], [0, 0, 1, 1], [], []>} : vector<16x16xbf16>, vector<16x8xbf16>, vector<16x8xf32> -> vector<16x8xf32>
      %97 = vector.extract_strided_slice %13 {offsets = [0, 24], sizes = [16, 8], strides = [1, 1]} : vector<16x96xf32> to vector<16x8xf32>
      %cst_29 = arith.constant 0.353553385 : f32
      %98 = vector.broadcast %cst_29 : f32 to vector<16x8xf32>
      %99 = arith.mulf %97, %98 : vector<16x8xf32>
      %100 = arith.truncf %99 : vector<16x8xf32> to vector<16x8xbf16>
      %101 = vector.extract_strided_slice %15 {offsets = [24, 0], sizes = [8, 16], strides = [1, 1]} : vector<32x16xf32> to vector<8x16xf32>
      %102 = arith.truncf %101 : vector<8x16xf32> to vector<8x16xbf16>
      %103 = vector.extract_strided_slice %13 {offsets = [0, 88], sizes = [16, 8], strides = [1, 1]} : vector<16x96xf32> to vector<16x8xf32>
      %104 = arith.truncf %103 : vector<16x8xf32> to vector<16x8xbf16>
      %cst_30 = arith.constant dense<0.000000e+00> : vector<16x16xf32>
      %105 = tpu.matmul %100, %102, %cst_30 {dimension_numbers = #tpu.dot_dimension_numbers<[1], [0], [0], [1], [0, 0, 1, 1], [], []>} : vector<16x8xbf16>, vector<8x16xbf16>, vector<16x16xf32> -> vector<16x16xf32>
      %106 = vector.broadcast %5 : vector<1x16xf32> to vector<16x16xf32>
      %107 = arith.addf %105, %106 : vector<16x16xf32>
      %cst_31 = arith.constant dense<0xFF800000> : vector<16xf32>
      %108 = vector.multi_reduction <maximumf>, %107, %cst_31 [1] : vector<16x16xf32> to vector<16xf32>
      %109 = vector.shape_cast %108 : vector<16xf32> to vector<16x1xf32>
      %110 = vector.broadcast %109 : vector<16x1xf32> to vector<16x16xf32>
      %111 = arith.subf %107, %110 : vector<16x16xf32>
      %112 = arith.truncf %111 : vector<16x16xf32> to vector<16x16xbf16>
      %113 = math.exp %112 : vector<16x16xbf16>
      %114 = arith.extf %113 : vector<16x16xbf16> to vector<16x16xf32>
      %cst_32 = arith.constant dense<0.000000e+00> : vector<16xf32>
      %115 = vector.multi_reduction <add>, %114, %cst_32 [1] : vector<16x16xf32> to vector<16xf32>
      %116 = vector.shape_cast %115 : vector<16xf32> to vector<16x1xf32>
      %117 = tpu.reciprocal %116 {approx = true} : vector<16x1xf32> -> vector<16x1xf32>
      %118 = vector.broadcast %117 : vector<16x1xf32> to vector<16x16xf32>
      %119 = arith.mulf %114, %118 : vector<16x16xf32>
      %120 = arith.truncf %119 : vector<16x16xf32> to vector<16x16xbf16>
      %cst_33 = arith.constant dense<0.000000e+00> : vector<16x8xf32>
      %121 = tpu.matmul %120, %104, %cst_33 {dimension_numbers = #tpu.dot_dimension_numbers<[1], [0], [0], [1], [0, 0, 1, 1], [], []>} : vector<16x16xbf16>, vector<16x8xbf16>, vector<16x8xf32> -> vector<16x8xf32>
      %122 = tpu.concatenate %46, %71, %96, %121 in 1 : vector<16x8xf32>, vector<16x8xf32>, vector<16x8xf32>, vector<16x8xf32> -> vector<16x32xf32>
      %c0_34 = arith.constant 0 : index
      %c0_35 = arith.constant 0 : index
      %c0_36 = arith.constant 0 : index
      %123 = vector.load %arg8[%c0_34, %c0_35, %c0_36] : memref<1x32x32xbf16, #tpu.memory_space<vmem>>, vector<1x32x32xbf16>
      %124 = vector.shape_cast %123 : vector<1x32x32xbf16> to vector<32x32xbf16>
      %125 = arith.truncf %122 : vector<16x32xf32> to vector<16x32xbf16>
      %cst_37 = arith.constant dense<0.000000e+00> : vector<16x32xf32>
      %126 = tpu.matmul %125, %124, %cst_37 {dimension_numbers = #tpu.dot_dimension_numbers<[1], [0], [0], [1], [0, 0, 1, 1], [], []>} : vector<16x32xbf16>, vector<32x32xbf16>, vector<16x32xf32> -> vector<16x32xf32>
      %127 = arith.addf %3, %126 : vector<16x32xf32>
      %c0_38 = arith.constant 0 : index
      %c0_39 = arith.constant 0 : index
      %c0_40 = arith.constant 0 : index
      %128 = vector.load %arg9[%c0_38, %c0_39, %c0_40] : memref<1x1x32xf32, #tpu.memory_space<vmem>>, vector<1x1x32xf32>
      %129 = vector.shape_cast %128 : vector<1x1x32xf32> to vector<1x32xf32>
      %130 = vector.broadcast %129 : vector<1x32xf32> to vector<16x32xf32>
      %131 = arith.addf %127, %130 : vector<16x32xf32>
      %c0_41 = arith.constant 0 : index
      %c0_42 = arith.constant 0 : index
      %c0_43 = arith.constant 0 : index
      %132 = vector.load %arg10[%c0_41, %c0_42, %c0_43] : memref<1x1x32xf32, #tpu.memory_space<vmem>>, vector<1x1x32xf32>
      %133 = vector.shape_cast %132 : vector<1x1x32xf32> to vector<1x32xf32>
      %c0_44 = arith.constant 0 : index
      %c0_45 = arith.constant 0 : index
      %c0_46 = arith.constant 0 : index
      %134 = vector.load %arg11[%c0_44, %c0_45, %c0_46] : memref<1x1x32xf32, #tpu.memory_space<vmem>>, vector<1x1x32xf32>
      %135 = vector.shape_cast %134 : vector<1x1x32xf32> to vector<1x32xf32>
      %cst_47 = arith.constant dense<0.000000e+00> : vector<16xf32>
      %136 = vector.multi_reduction <add>, %131, %cst_47 [1] : vector<16x32xf32> to vector<16xf32>
      %137 = vector.shape_cast %136 : vector<16xf32> to vector<16x1xf32>
      %cst_48 = arith.constant 3.200000e+01 : f32
      %138 = vector.broadcast %cst_48 : f32 to vector<16x1xf32>
      %139 = arith.divf %137, %138 : vector<16x1xf32>
      %140 = vector.broadcast %139 : vector<16x1xf32> to vector<16x32xf32>
      %141 = arith.subf %131, %140 : vector<16x32xf32>
      %142 = arith.mulf %141, %141 : vector<16x32xf32>
      %cst_49 = arith.constant dense<0.000000e+00> : vector<16xf32>
      %143 = vector.multi_reduction <add>, %142, %cst_49 [1] : vector<16x32xf32> to vector<16xf32>
      %144 = vector.shape_cast %143 : vector<16xf32> to vector<16x1xf32>
      %cst_50 = arith.constant 3.200000e+01 : f32
      %145 = vector.broadcast %cst_50 : f32 to vector<16x1xf32>
      %146 = arith.divf %144, %145 : vector<16x1xf32>
      %147 = vector.broadcast %139 : vector<16x1xf32> to vector<16x32xf32>
      %148 = arith.subf %131, %147 : vector<16x32xf32>
      %cst_51 = arith.constant 9.99999996E-13 : f32
      %149 = vector.broadcast %cst_51 : f32 to vector<16x1xf32>
      %150 = arith.addf %146, %149 : vector<16x1xf32>
      %151 = math.rsqrt %150 : vector<16x1xf32>
      %152 = vector.broadcast %151 : vector<16x1xf32> to vector<16x32xf32>
      %153 = arith.mulf %148, %152 : vector<16x32xf32>
      %154 = vector.broadcast %133 : vector<1x32xf32> to vector<16x32xf32>
      %155 = arith.mulf %153, %154 : vector<16x32xf32>
      %156 = vector.broadcast %135 : vector<1x32xf32> to vector<16x32xf32>
      %157 = arith.addf %155, %156 : vector<16x32xf32>
      %c0_52 = arith.constant 0 : index
      %c0_53 = arith.constant 0 : index
      %c0_54 = arith.constant 0 : index
      %158 = vector.load %arg12[%c0_52, %c0_53, %c0_54] : memref<1x32x64xbf16, #tpu.memory_space<vmem>>, vector<1x32x64xbf16>
      %159 = vector.shape_cast %158 : vector<1x32x64xbf16> to vector<32x64xbf16>
      %160 = arith.truncf %157 : vector<16x32xf32> to vector<16x32xbf16>
      %cst_55 = arith.constant dense<0.000000e+00> : vector<16x64xf32>
      %161 = tpu.matmul %160, %159, %cst_55 {dimension_numbers = #tpu.dot_dimension_numbers<[1], [0], [0], [1], [0, 0, 1, 1], [], []>} : vector<16x32xbf16>, vector<32x64xbf16>, vector<16x64xf32> -> vector<16x64xf32>
      %c0_56 = arith.constant 0 : index
      %c0_57 = arith.constant 0 : index
      %c0_58 = arith.constant 0 : index
      %162 = vector.load %arg13[%c0_56, %c0_57, %c0_58] : memref<1x1x64xf32, #tpu.memory_space<vmem>>, vector<1x1x64xf32>
      %163 = vector.shape_cast %162 : vector<1x1x64xf32> to vector<1x64xf32>
      %164 = vector.broadcast %163 : vector<1x64xf32> to vector<16x64xf32>
      %165 = arith.addf %161, %164 : vector<16x64xf32>
      %cst_59 = arith.constant 4.471500e-02 : f32
      %166 = vector.broadcast %cst_59 : f32 to vector<16x64xf32>
      %167 = arith.mulf %166, %165 : vector<16x64xf32>
      %168 = arith.mulf %167, %165 : vector<16x64xf32>
      %169 = arith.mulf %168, %165 : vector<16x64xf32>
      %170 = arith.addf %165, %169 : vector<16x64xf32>
      %cst_60 = arith.constant 0.797884583 : f32
      %171 = vector.broadcast %cst_60 : f32 to vector<16x64xf32>
      %172 = arith.mulf %171, %170 : vector<16x64xf32>
      %173 = arith.truncf %172 : vector<16x64xf32> to vector<16x64xbf16>
      %174 = math.tanh %173 : vector<16x64xbf16>
      %175 = arith.extf %174 : vector<16x64xbf16> to vector<16x64xf32>
      %cst_61 = arith.constant 5.000000e-01 : f32
      %176 = vector.broadcast %cst_61 : f32 to vector<16x64xf32>
      %177 = arith.mulf %176, %165 : vector<16x64xf32>
      %cst_62 = arith.constant 1.000000e+00 : f32
      %178 = vector.broadcast %cst_62 : f32 to vector<16x64xf32>
      %179 = arith.addf %178, %175 : vector<16x64xf32>
      %180 = arith.mulf %177, %179 : vector<16x64xf32>
      %c0_63 = arith.constant 0 : index
      %c0_64 = arith.constant 0 : index
      %c0_65 = arith.constant 0 : index
      %181 = vector.load %arg14[%c0_63, %c0_64, %c0_65] : memref<1x64x32xbf16, #tpu.memory_space<vmem>>, vector<1x64x32xbf16>
      %182 = vector.shape_cast %181 : vector<1x64x32xbf16> to vector<64x32xbf16>
      %183 = arith.truncf %180 : vector<16x64xf32> to vector<16x64xbf16>
      %cst_66 = arith.constant dense<0.000000e+00> : vector<16x32xf32>
      %184 = tpu.matmul %183, %182, %cst_66 {dimension_numbers = #tpu.dot_dimension_numbers<[1], [0], [0], [1], [0, 0, 1, 1], [], []>} : vector<16x64xbf16>, vector<64x32xbf16>, vector<16x32xf32> -> vector<16x32xf32>
      %185 = arith.addf %157, %184 : vector<16x32xf32>
      %c0_67 = arith.constant 0 : index
      %c0_68 = arith.constant 0 : index
      %c0_69 = arith.constant 0 : index
      %186 = vector.load %arg15[%c0_67, %c0_68, %c0_69] : memref<1x1x32xf32, #tpu.memory_space<vmem>>, vector<1x1x32xf32>
      %187 = vector.shape_cast %186 : vector<1x1x32xf32> to vector<1x32xf32>
      %188 = vector.broadcast %187 : vector<1x32xf32> to vector<16x32xf32>
      %189 = arith.addf %185, %188 : vector<16x32xf32>
      %c0_70 = arith.constant 0 : index
      %c0_71 = arith.constant 0 : index
      %c0_72 = arith.constant 0 : index
      %190 = vector.load %arg16[%c0_70, %c0_71, %c0_72] : memref<1x1x32xf32, #tpu.memory_space<vmem>>, vector<1x1x32xf32>
      %191 = vector.shape_cast %190 : vector<1x1x32xf32> to vector<1x32xf32>
      %c0_73 = arith.constant 0 : index
      %c0_74 = arith.constant 0 : index
      %c0_75 = arith.constant 0 : index
      %192 = vector.load %arg17[%c0_73, %c0_74, %c0_75] : memref<1x1x32xf32, #tpu.memory_space<vmem>>, vector<1x1x32xf32>
      %193 = vector.shape_cast %192 : vector<1x1x32xf32> to vector<1x32xf32>
      %cst_76 = arith.constant dense<0.000000e+00> : vector<16xf32>
      %194 = vector.multi_reduction <add>, %189, %cst_76 [1] : vector<16x32xf32> to vector<16xf32>
      %195 = vector.shape_cast %194 : vector<16xf32> to vector<16x1xf32>
      %cst_77 = arith.constant 3.200000e+01 : f32
      %196 = vector.broadcast %cst_77 : f32 to vector<16x1xf32>
      %197 = arith.divf %195, %196 : vector<16x1xf32>
      %198 = vector.broadcast %197 : vector<16x1xf32> to vector<16x32xf32>
      %199 = arith.subf %189, %198 : vector<16x32xf32>
      %200 = arith.mulf %199, %199 : vector<16x32xf32>
      %cst_78 = arith.constant dense<0.000000e+00> : vector<16xf32>
      %201 = vector.multi_reduction <add>, %200, %cst_78 [1] : vector<16x32xf32> to vector<16xf32>
      %202 = vector.shape_cast %201 : vector<16xf32> to vector<16x1xf32>
      %cst_79 = arith.constant 3.200000e+01 : f32
      %203 = vector.broadcast %cst_79 : f32 to vector<16x1xf32>
      %204 = arith.divf %202, %203 : vector<16x1xf32>
      %205 = vector.broadcast %197 : vector<16x1xf32> to vector<16x32xf32>
      %206 = arith.subf %189, %205 : vector<16x32xf32>
      %cst_80 = arith.constant 9.99999996E-13 : f32
      %207 = vector.broadcast %cst_80 : f32 to vector<16x1xf32>
      %208 = arith.addf %204, %207 : vector<16x1xf32>
      %209 = math.rsqrt %208 : vector<16x1xf32>
      %210 = vector.broadcast %209 : vector<16x1xf32> to vector<16x32xf32>
      %211 = arith.mulf %206, %210 : vector<16x32xf32>
      %212 = vector.broadcast %191 : vector<1x32xf32> to vector<16x32xf32>
      %213 = arith.mulf %211, %212 : vector<16x32xf32>
      %214 = vector.broadcast %193 : vector<1x32xf32> to vector<16x32xf32>
      %215 = arith.addf %213, %214 : vector<16x32xf32>
      %c0_81 = arith.constant 0 : index
      %c0_82 = arith.constant 0 : index
      %216 = vector.load %arg19[%c0_81, %c0_82] : memref<16x32xf32, #tpu.memory_space<vmem>>, vector<16x32xf32>
      tpu.vector_store %arg19[%c0_81, %c0_82], %215 {strides = array<i32>} : memref<16x32xf32, #tpu.memory_space<vmem>>, vector<16x32xf32>,
    } else {
    }
    %c1_i32_12 = arith.constant 1 : i32
    %19 = arith.cmpi eq, %arg1, %c1_i32_12 : i32
    %20 = arith.extui %19 : i1 to i32
    %c0_i32_13 = arith.constant 0 : i32
    %21 = arith.cmpi ne, %20, %c0_i32_13 : i32
    scf.if %21 {
      %cst_14 = arith.constant 0.000000e+00 : f32
      %22 = vector.broadcast %cst_14 : f32 to vector<1x16xf32>
      %23 = vector.extract_strided_slice %13 {offsets = [0, 0], sizes = [1, 8], strides = [1, 1]} : vector<16x96xf32> to vector<1x8xf32>
      %24 = vector.extract_strided_slice %15 {offsets = [0, 0], sizes = [8, 16], strides = [1, 1]} : vector<32x16xf32> to vector<8x16xf32>
      %cst_15 = arith.constant dense<0.000000e+00> : vector<1x16xf32>
      %25 = tpu.matmul %23, %24, %cst_15 {dimension_numbers = #tpu.dot_dimension_numbers<[1], [0], [0], [1], [0, 0, 1, 1], [], []>} : vector<1x8xf32>, vector<8x16xf32>, vector<1x16xf32> -> vector<1x16xf32>
      %cst_16 = arith.constant 0.353553385 : f32
      %26 = vector.broadcast %cst_16 : f32 to vector<1x16xf32>
      %27 = arith.mulf %25, %26 : vector<1x16xf32>
      %28 = arith.addf %27, %5 : vector<1x16xf32>
      %cst_17 = arith.constant dense<0xFF800000> : vector<1xf32>
      %29 = vector.multi_reduction <maximumf>, %28, %cst_17 [1] : vector<1x16xf32> to vector<1xf32>
      %30 = vector.shape_cast %29 : vector<1xf32> to vector<1x1xf32>
      %31 = vector.broadcast %30 : vector<1x1xf32> to vector<1x16xf32>
      %32 = arith.subf %28, %31 : vector<1x16xf32>
      %33 = math.exp %32 : vector<1x16xf32>
      %cst_18 = arith.constant dense<0.000000e+00> : vector<1xf32>
      %34 = vector.multi_reduction <add>, %33, %cst_18 [1] : vector<1x16xf32> to vector<1xf32>
      %35 = vector.shape_cast %34 : vector<1xf32> to vector<1x1xf32>
      %36 = vector.broadcast %35 : vector<1x1xf32> to vector<1x16xf32>
      %37 = arith.divf %33, %36 : vector<1x16xf32>
      %38 = arith.addf %22, %37 : vector<1x16xf32>
      %39 = vector.extract_strided_slice %13 {offsets = [0, 8], sizes = [1, 8], strides = [1, 1]} : vector<16x96xf32> to vector<1x8xf32>
      %40 = vector.extract_strided_slice %15 {offsets = [8, 0], sizes = [8, 16], strides = [1, 1]} : vector<32x16xf32> to vector<8x16xf32>
      %cst_19 = arith.constant dense<0.000000e+00> : vector<1x16xf32>
      %41 = tpu.matmul %39, %40, %cst_19 {dimension_numbers = #tpu.dot_dimension_numbers<[1], [0], [0], [1], [0, 0, 1, 1], [], []>} : vector<1x8xf32>, vector<8x16xf32>, vector<1x16xf32> -> vector<1x16xf32>
      %cst_20 = arith.constant 0.353553385 : f32
      %42 = vector.broadcast %cst_20 : f32 to vector<1x16xf32>
      %43 = arith.mulf %41, %42 : vector<1x16xf32>
      %44 = arith.addf %43, %5 : vector<1x16xf32>
      %cst_21 = arith.constant dense<0xFF800000> : vector<1xf32>
      %45 = vector.multi_reduction <maximumf>, %44, %cst_21 [1] : vector<1x16xf32> to vector<1xf32>
      %46 = vector.shape_cast %45 : vector<1xf32> to vector<1x1xf32>
      %47 = vector.broadcast %46 : vector<1x1xf32> to vector<1x16xf32>
      %48 = arith.subf %44, %47 : vector<1x16xf32>
      %49 = math.exp %48 : vector<1x16xf32>
      %cst_22 = arith.constant dense<0.000000e+00> : vector<1xf32>
      %50 = vector.multi_reduction <add>, %49, %cst_22 [1] : vector<1x16xf32> to vector<1xf32>
      %51 = vector.shape_cast %50 : vector<1xf32> to vector<1x1xf32>
      %52 = vector.broadcast %51 : vector<1x1xf32> to vector<1x16xf32>
      %53 = arith.divf %49, %52 : vector<1x16xf32>
      %54 = arith.addf %38, %53 : vector<1x16xf32>
      %55 = vector.extract_strided_slice %13 {offsets = [0, 16], sizes = [1, 8], strides = [1, 1]} : vector<16x96xf32> to vector<1x8xf32>
      %56 = vector.extract_strided_slice %15 {offsets = [16, 0], sizes = [8, 16], strides = [1, 1]} : vector<32x16xf32> to vector<8x16xf32>
      %cst_23 = arith.constant dense<0.000000e+00> : vector<1x16xf32>
      %57 = tpu.matmul %55, %56, %cst_23 {dimension_numbers = #tpu.dot_dimension_numbers<[1], [0], [0], [1], [0, 0, 1, 1], [], []>} : vector<1x8xf32>, vector<8x16xf32>, vector<1x16xf32> -> vector<1x16xf32>
      %cst_24 = arith.constant 0.353553385 : f32
      %58 = vector.broadcast %cst_24 : f32 to vector<1x16xf32>
      %59 = arith.mulf %57, %58 : vector<1x16xf32>
      %60 = arith.addf %59, %5 : vector<1x16xf32>
      %cst_25 = arith.constant dense<0xFF800000> : vector<1xf32>
      %61 = vector.multi_reduction <maximumf>, %60, %cst_25 [1] : vector<1x16xf32> to vector<1xf32>
      %62 = vector.shape_cast %61 : vector<1xf32> to vector<1x1xf32>
      %63 = vector.broadcast %62 : vector<1x1xf32> to vector<1x16xf32>
      %64 = arith.subf %60, %63 : vector<1x16xf32>
      %65 = math.exp %64 : vector<1x16xf32>
      %cst_26 = arith.constant dense<0.000000e+00> : vector<1xf32>
      %66 = vector.multi_reduction <add>, %65, %cst_26 [1] : vector<1x16xf32> to vector<1xf32>
      %67 = vector.shape_cast %66 : vector<1xf32> to vector<1x1xf32>
      %68 = vector.broadcast %67 : vector<1x1xf32> to vector<1x16xf32>
      %69 = arith.divf %65, %68 : vector<1x16xf32>
      %70 = arith.addf %54, %69 : vector<1x16xf32>
      %71 = vector.extract_strided_slice %13 {offsets = [0, 24], sizes = [1, 8], strides = [1, 1]} : vector<16x96xf32> to vector<1x8xf32>
      %72 = vector.extract_strided_slice %15 {offsets = [24, 0], sizes = [8, 16], strides = [1, 1]} : vector<32x16xf32> to vector<8x16xf32>
      %cst_27 = arith.constant dense<0.000000e+00> : vector<1x16xf32>
      %73 = tpu.matmul %71, %72, %cst_27 {dimension_numbers = #tpu.dot_dimension_numbers<[1], [0], [0], [1], [0, 0, 1, 1], [], []>} : vector<1x8xf32>, vector<8x16xf32>, vector<1x16xf32> -> vector<1x16xf32>
      %cst_28 = arith.constant 0.353553385 : f32
      %74 = vector.broadcast %cst_28 : f32 to vector<1x16xf32>
      %75 = arith.mulf %73, %74 : vector<1x16xf32>
      %76 = arith.addf %75, %5 : vector<1x16xf32>
      %cst_29 = arith.constant dense<0xFF800000> : vector<1xf32>
      %77 = vector.multi_reduction <maximumf>, %76, %cst_29 [1] : vector<1x16xf32> to vector<1xf32>
      %78 = vector.shape_cast %77 : vector<1xf32> to vector<1x1xf32>
      %79 = vector.broadcast %78 : vector<1x1xf32> to vector<1x16xf32>
      %80 = arith.subf %76, %79 : vector<1x16xf32>
      %81 = math.exp %80 : vector<1x16xf32>
      %cst_30 = arith.constant dense<0.000000e+00> : vector<1xf32>
      %82 = vector.multi_reduction <add>, %81, %cst_30 [1] : vector<1x16xf32> to vector<1xf32>
      %83 = vector.shape_cast %82 : vector<1xf32> to vector<1x1xf32>
      %84 = vector.broadcast %83 : vector<1x1xf32> to vector<1x16xf32>
      %85 = arith.divf %81, %84 : vector<1x16xf32>
      %86 = arith.addf %70, %85 : vector<1x16xf32>
      %c0_31 = arith.constant 0 : index
      %c0_32 = arith.constant 0 : index
      %c0_33 = arith.constant 0 : index
      %87 = vector.load %arg18[%c0_31, %c0_32, %c0_33] : memref<1x1x16xf32, #tpu.memory_space<vmem>>, vector<1x1x16xf32>
      %88 = vector.shape_cast %87 : vector<1x1x16xf32> to vector<1x16xf32>
      %89 = vector.shape_cast %86 : vector<1x16xf32> to vector<1x1x16xf32>
      tpu.vector_store %arg18[%c0_31, %c0_32, %c0_33], %89 {strides = array<i32>} : memref<1x1x16xf32, #tpu.memory_space<vmem>>, vector<1x1x16xf32>,
    } else {
    }
    return
  }
  func.func @transform_0(%arg0: i32, %arg1: i32) -> (i32, i32, i32) {
    %c0_i32 = arith.constant 0 : i32
    %c0_i32_0 = arith.constant 0 : i32
    %c0_i32_1 = arith.constant 0 : i32
    return %arg0, %c0_i32, %c0_i32_0 : i32, i32, i32
  }
  func.func @transform_1(%arg0: i32, %arg1: i32) -> (i32, i32, i32) {
    %c0_i32 = arith.constant 0 : i32
    %c0_i32_0 = arith.constant 0 : i32
    %c0_i32_1 = arith.constant 0 : i32
    return %arg0, %c0_i32, %c0_i32_0 : i32, i32, i32
  }
  func.func @transform_2(%arg0: i32, %arg1: i32) -> (i32, i32) {
    %c0_i32 = arith.constant 0 : i32
    %c0_i32_0 = arith.constant 0 : i32
    %c0_i32_1 = arith.constant 0 : i32
    return %c0_i32, %c0_i32_0 : i32, i32
  }
  func.func @transform_3(%arg0: i32, %arg1: i32) -> (i32, i32) {
    %c0_i32 = arith.constant 0 : i32
    %c0_i32_0 = arith.constant 0 : i32
    %c0_i32_1 = arith.constant 0 : i32
    return %c0_i32, %c0_i32_0 : i32, i32
  }
  func.func @transform_4(%arg0: i32, %arg1: i32) -> (i32, i32, i32) {
    %c0_i32 = arith.constant 0 : i32
    %c0_i32_0 = arith.constant 0 : i32
    %c0_i32_1 = arith.constant 0 : i32
    return %arg1, %c0_i32, %c0_i32_0 : i32, i32, i32
  }
  func.func @transform_5(%arg0: i32, %arg1: i32) -> (i32, i32, i32) {
    %c0_i32 = arith.constant 0 : i32
    %c0_i32_0 = arith.constant 0 : i32
    %c0_i32_1 = arith.constant 0 : i32
    return %arg1, %c0_i32, %c0_i32_0 : i32, i32, i32
  }
  func.func @transform_6(%arg0: i32, %arg1: i32) -> (i32, i32, i32) {
    %c0_i32 = arith.constant 0 : i32
    %c0_i32_0 = arith.constant 0 : i32
    %c0_i32_1 = arith.constant 0 : i32
    return %arg1, %c0_i32, %c0_i32_0 : i32, i32, i32
  }
  func.func @transform_7(%arg0: i32, %arg1: i32) -> (i32, i32, i32) {
    %c0_i32 = arith.constant 0 : i32
    %c0_i32_0 = arith.constant 0 : i32
    %c0_i32_1 = arith.constant 0 : i32
    return %arg1, %c0_i32, %c0_i32_0 : i32, i32, i32
  }
  func.func @transform_8(%arg0: i32, %arg1: i32) -> (i32, i32, i32) {
    %c0_i32 = arith.constant 0 : i32
    %c0_i32_0 = arith.constant 0 : i32
    %c0_i32_1 = arith.constant 0 : i32
    return %arg1, %c0_i32, %c0_i32_0 : i32, i32, i32
  }
  func.func @transform_9(%arg0: i32, %arg1: i32) -> (i32, i32, i32) {
    %c0_i32 = arith.constant 0 : i32
    %c0_i32_0 = arith.constant 0 : i32
    %c0_i32_1 = arith.constant 0 : i32
    return %arg1, %c0_i32, %c0_i32_0 : i32, i32, i32
  }
  func.func @transform_10(%arg0: i32, %arg1: i32) -> (i32, i32, i32) {
    %c0_i32 = arith.constant 0 : i32
    %c0_i32_0 = arith.constant 0 : i32
    %c0_i32_1 = arith.constant 0 : i32
    return %arg1, %c0_i32, %c0_i32_0 : i32, i32, i32
  }
  func.func @transform_11(%arg0: i32, %arg1: i32) -> (i32, i32, i32) {
    %c0_i32 = arith.constant 0 : i32
    %c0_i32_0 = arith.constant 0 : i32
    %c0_i32_1 = arith.constant 0 : i32
    return %arg1, %c0_i32, %c0_i32_0 : i32, i32, i32
  }
  func.func @transform_12(%arg0: i32, %arg1: i32) -> (i32, i32, i32) {
    %c0_i32 = arith.constant 0 : i32
    %c0_i32_0 = arith.constant 0 : i32
    %c0_i32_1 = arith.constant 0 : i32
    return %arg1, %c0_i32, %c0_i32_0 : i32, i32, i32
  }
  func.func @transform_13(%arg0: i32, %arg1: i32) -> (i32, i32, i32) {
    %c0_i32 = arith.constant 0 : i32
    %c0_i32_0 = arith.constant 0 : i32
    %c0_i32_1 = arith.constant 0 : i32
    return %arg1, %c0_i32, %c0_i32_0 : i32, i32, i32
  }
  func.func @transform_14(%arg0: i32, %arg1: i32) -> (i32, i32, i32) {
    %c0_i32 = arith.constant 0 : i32
    %c0_i32_0 = arith.constant 0 : i32
    %c0_i32_1 = arith.constant 0 : i32
    return %arg1, %c0_i32, %c0_i32_0 : i32, i32, i32
  }
  func.func @transform_15(%arg0: i32, %arg1: i32) -> (i32, i32, i32) {
    %c0_i32 = arith.constant 0 : i32
    %c0_i32_0 = arith.constant 0 : i32
    %c0_i32_1 = arith.constant 0 : i32
    return %arg1, %c0_i32, %c0_i32_0 : i32, i32, i32
  }
  func.func @transform_16(%arg0: i32, %arg1: i32) -> (i32, i32, i32) {
    %c0_i32 = arith.constant 0 : i32
    %c0_i32_0 = arith.constant 0 : i32
    %c0_i32_1 = arith.constant 0 : i32
    return %arg0, %c0_i32, %c0_i32_0 : i32, i32, i32
  }
}

</mosaic_0001>

<llo_original>
// kernel: tpu_custom_call.1
$region0: #{tpu_custom_call.1}
  #allocation0 [shape = 'u32[]', space=smem, size = 0x4, offset = 0x4, fixed_abs, tag = 'smem constant byte address 0x4 - core index']
  #allocation1 [shape = 'u32[72,128]{1,0:T(1,128)}', space=vmem, size = 0x9000, scoped, tag = 'internal scratch']
  #allocation2 [shape = 'f32[16,32]{1,0:T(8,128)}', space=vmem, size = 0x2000, scoped, tag = 'scratch operand']
  %s0 = inlined_call_operand.vmem [shape: f32[2,16,32], index: 0, kind: input, shape index: {}]
  %s1 = inlined_call_operand.hbm [shape: f32[2,1,16], index: 1, kind: input, shape index: {}]
  %s2 = inlined_call_operand.vmem [shape: f32[1,32], index: 2, kind: input, shape index: {}]
  %s3 = inlined_call_operand.hbm [shape: f32[1,32], index: 3, kind: input, shape index: {}]
  %s4 = inlined_call_operand.vmem [shape: bf16[2,32,96], index: 4, kind: input, shape index: {}]
  %s5 = inlined_call_operand.vmem [shape: f32[2,1,96], index: 5, kind: input, shape index: {}]
  %s6 = inlined_call_operand.vmem [shape: bf16[2,32,32], index: 6, kind: input, shape index: {}]
  %s7 = inlined_call_operand.vmem [shape: f32[2,1,32], index: 7, kind: input, shape index: {}]
  %s8 = inlined_call_operand.vmem [shape: f32[2,1,32], index: 8, kind: input, shape index: {}]
  %s9 = inlined_call_operand.hbm [shape: f32[2,1,32], index: 9, kind: input, shape index: {}]
  %s10 = inlined_call_operand.hbm [shape: bf16[2,32,64], index: 10, kind: input, shape index: {}]
  %s11 = inlined_call_operand.vmem [shape: f32[2,1,64], index: 11, kind: input, shape index: {}]
  %s12 = inlined_call_operand.vmem [shape: bf16[2,64,32], index: 12, kind: input, shape index: {}]
  %s13 = inlined_call_operand.vmem [shape: f32[2,1,32], index: 13, kind: input, shape index: {}]
  %s14 = inlined_call_operand.vmem [shape: f32[2,1,32], index: 14, kind: input, shape index: {}]
  %s15 = inlined_call_operand.hbm [shape: f32[2,1,32], index: 15, kind: input, shape index: {}]
  %s16 = inlined_call_operand.hbm [shape: f32[2,1,16], index: 16, kind: output, shape index: {}]
  %s17 = sld [smem:[#allocation0]]
  $region129: #{tpu_custom_call.1} parent=0
    _
  %s19 = ssub.s32 1, %s17
  %s20 = scalar_select 0, %s19, %s17
  $region1: #{tpu_custom_call.1} parent=0
    #allocation3 [shape = 'u8[1024]{0}', space=vmem, size = 0x400, scoped, tag = 'input window, operand 1']
    #allocation4 [shape = 's32[2]{0}', space=sflag, size = 0x8, scoped, tag = 'scoped memory for tpu_custom_call.1']
    #allocation5 [shape = 's32[2]{0}', space=sflag, size = 0x8, scoped, tag = 'scoped memory for tpu_custom_call.1']
    #allocation6 [shape = 'u8[512]{0}', space=vmem, size = 0x400, scoped, tag = 'input window, operand 3, single buffered']
    #allocation7 [shape = 's32[1]{0}', space=sflag, size = 0x4, scoped, tag = 'scoped memory for tpu_custom_call.1']
    #allocation8 [shape = 'u8[1024]{0}', space=vmem, size = 0x400, scoped, tag = 'input window, operand 9']
    #allocation9 [shape = 'u8[16384]{0}', space=vmem, size = 0x4000, scoped, tag = 'input window, operand 10']
    #allocation10 [shape = 'u8[1024]{0}', space=vmem, size = 0x400, scoped, tag = 'input window, operand 15']
    #allocation11 [shape = 'u8[1024]{0}', space=vmem, size = 0x400, scoped, tag = 'output window, operand 0']
    %21 = vsyncpa [#allocation4], 0
    %s22 = scalar_lea.sflag [#allocation4], 1
    %23 = vsyncpa %s22, 0
    %24 = vsyncpa [#allocation7], 0
    %25 = vsyncpa [#allocation5], 0
    %s26 = scalar_lea.sflag [#allocation5], 1
    %27 = vsyncpa %s26, 0
    loop: start=0, step=1, limit=6
    $region2: #{tpu_custom_call.1} parent=1 // loop_pre_header
      _
    $region3: #{tpu_custom_call.1} parent=1 // loop_header
      %s29 = sphi 0, %s33
      %p30 = scmp.ge.s32.totalorder %s29, 6
      %s36 = sphi 0, %s48
      %s37 = sphi 0, %s44
      %s38 = sphi 0, %s36
      %s39 = sphi 0, %s37
      %s40 = sphi 0, %s38
      %s41 = sphi 0, %s39
      %s51 = sphi 0, %s53
      %s54 = sphi 0, %s51
      %s55 = sphi 0, %s54
      %s71 = sphi 0, %s55
      %s77 = sphi 0, %s79
      %s80 = sphi 0, %s77
      %s81 = sphi 0, %s80
      %s97 = sphi 0, %s81
      %s101 = sphi 0, %s101
      %s103 = sphi 0, %s101
      %s104 = sphi 0, %s103
      %s118 = sphi 0, %s104
      %s122 = sphi 0, %s122
      %s124 = sphi 0, %s122
      %s125 = sphi 0, %s124
      %s139 = sphi 0, %s125
      %s145 = sphi 0, %s147
      %s148 = sphi 0, %s145
      %s149 = sphi 0, %s148
      %s165 = sphi 0, %s149
      %s171 = sphi 0, %s173
      %s174 = sphi 0, %s171
      %s175 = sphi 0, %s174
      %s191 = sphi 0, %s175
      %s197 = sphi 0, %s199
      %s200 = sphi 0, %s197
      %s201 = sphi 0, %s200
      %s217 = sphi 0, %s201
      %s223 = sphi 0, %s225
      %s226 = sphi 0, %s223
      %s227 = sphi 0, %s226
      %s243 = sphi 0, %s227
      %s249 = sphi 0, %s251
      %s252 = sphi 0, %s249
      %s253 = sphi 0, %s252
      %s269 = sphi 0, %s253
      %s275 = sphi 0, %s277
      %s278 = sphi 0, %s275
      %s279 = sphi 0, %s278
      %s295 = sphi 0, %s279
      %s301 = sphi 0, %s303
      %s304 = sphi 0, %s301
      %s305 = sphi 0, %s304
      %s321 = sphi 0, %s305
      %s327 = sphi 0, %s329
      %s330 = sphi 0, %s327
      %s331 = sphi 0, %s330
      %s347 = sphi 0, %s331
      %s353 = sphi 0, %s355
      %s356 = sphi 0, %s353
      %s357 = sphi 0, %s356
      %s373 = sphi 0, %s357
      %s379 = sphi 0, %s381
      %s382 = sphi 0, %s379
      %s383 = sphi 0, %s382
      %s399 = sphi 0, %s383
      %s405 = sphi 0, %s407
      %s408 = sphi 0, %s405
      %s409 = sphi 0, %s408
      %s425 = sphi 0, %s409
      %s431 = sphi 0, %s433
      %s434 = sphi 0, %s431
      %s435 = sphi 0, %s434
      %s451 = sphi 0, %s435
      %s457 = sphi 0, %s459
      %s460 = sphi 0, %s457
      %s461 = sphi 0, %s460
      %s477 = sphi 0, %s461
    $region4: #{tpu_custom_call.1} parent=1 // loop_header_branch
      %32 = sbr.rel (%p30) target = $region8
    $region5: #{tpu_custom_call.1} parent=1 // loop_body
      %s34 = ssub.s32 %s29, 1
      %s35 = ssub.s32 %s29, 2
      %s42 = sadd.s32 1, %s37
      %p43 = scmp.ge.s32.totalorder %s42, 2
      %s44 = scalar_select %p43, 0, %s42
      %s45 = sadd.s32 1, %s36
      %s46 = scalar_select %p43, %s45, %s36
      %p47 = scmp.ge.s32.totalorder %s46, 2
      %s48 = scalar_select %p47, 0, %s46
      %s49 = ssub.s32 %s36, %s48
      %p50 = scmp.eq.s32.totalorder %s49, 0
      %s52 = sadd.s32 %s51, 1
      %s53 = scalar_select %p50, %s51, %s52
      %p56 = pneg %p50
      %p57 = scmp.eq.s32.totalorder %s29, 3
      %p58 = por %p56, %p57
      %p59 = scmp.ne.s32.totalorder %s51, %s54
      %p60 = scmp.eq.s32.totalorder %s29, 0
      %p61 = por %p59, %p60
      %p62 = scmp.ne.s32.totalorder %s51, %s54
      %p63 = scmp.eq.s32.totalorder %s34, 3
      %p64 = por %p62, %p63
      %p65 = scmp.ne.s32.totalorder %s54, %s55
      %p66 = scmp.eq.s32.totalorder %s34, 0
      %p67 = por %p65, %p66
      %p68 = scmp.ne.s32.totalorder %s54, %s55
      %p69 = scmp.eq.s32.totalorder %s35, 3
      %p70 = por %p68, %p69
      %p72 = scmp.ne.s32.totalorder %s55, %s71
      %p73 = scmp.eq.s32.totalorder %s35, 0
      %p74 = por %p72, %p73
      %s75 = ssub.s32 %s36, %s48
      %p76 = scmp.eq.s32.totalorder %s75, 0
      %s78 = sadd.s32 %s77, 1
      %s79 = scalar_select %p76, %s77, %s78
      %p82 = pneg %p76
      %p83 = scmp.eq.s32.totalorder %s29, 3
      %p84 = por %p82, %p83
      %p85 = scmp.ne.s32.totalorder %s77, %s80
      %p86 = scmp.eq.s32.totalorder %s29, 0
      %p87 = por %p85, %p86
      %p88 = scmp.ne.s32.totalorder %s77, %s80
      %p89 = scmp.eq.s32.totalorder %s34, 3
      %p90 = por %p88, %p89
      %p91 = scmp.ne.s32.totalorder %s80, %s81
      %p92 = scmp.eq.s32.totalorder %s34, 0
      %p93 = por %p91, %p92
      %p94 = scmp.ne.s32.totalorder %s80, %s81
      %p95 = scmp.eq.s32.totalorder %s35, 3
      %p96 = por %p94, %p95
      %p98 = scmp.ne.s32.totalorder %s81, %s97
      %p99 = scmp.eq.s32.totalorder %s35, 0
      %p100 = por %p98, %p99
      %s102 = sadd.s32 %s101, 1
      %p105 = scmp.eq.s32.totalorder %s29, 3
      %p106 = scmp.ne.s32.totalorder %s101, %s103
      %p107 = scmp.eq.s32.totalorder %s29, 0
      %p108 = por %p106, %p107
      %p109 = scmp.ne.s32.totalorder %s101, %s103
      %p110 = scmp.eq.s32.totalorder %s34, 3
      %p111 = por %p109, %p110
      %p112 = scmp.ne.s32.totalorder %s103, %s104
      %p113 = scmp.eq.s32.totalorder %s34, 0
      %p114 = por %p112, %p113
      %p115 = scmp.ne.s32.totalorder %s103, %s104
      %p116 = scmp.eq.s32.totalorder %s35, 3
      %p117 = por %p115, %p116
      %p119 = scmp.ne.s32.totalorder %s104, %s118
      %p120 = scmp.eq.s32.totalorder %s35, 0
      %p121 = por %p119, %p120
      %s123 = sadd.s32 %s122, 1
      %p126 = scmp.eq.s32.totalorder %s29, 3
      %p127 = scmp.ne.s32.totalorder %s122, %s124
      %p128 = scmp.eq.s32.totalorder %s29, 0
      %p129 = por %p127, %p128
      %p130 = scmp.ne.s32.totalorder %s122, %s124
      %p131 = scmp.eq.s32.totalorder %s34, 3
      %p132 = por %p130, %p131
      %p133 = scmp.ne.s32.totalorder %s124, %s125
      %p134 = scmp.eq.s32.totalorder %s34, 0
      %p135 = por %p133, %p134
      %p136 = scmp.ne.s32.totalorder %s124, %s125
      %p137 = scmp.eq.s32.totalorder %s35, 3
      %p138 = por %p136, %p137
      %p140 = scmp.ne.s32.totalorder %s125, %s139
      %p141 = scmp.eq.s32.totalorder %s35, 0
      %p142 = por %p140, %p141
      %s143 = ssub.s32 %s37, %s44
      %p144 = scmp.eq.s32.totalorder %s143, 0
      %s146 = sadd.s32 %s145, 1
      %s147 = scalar_select %p144, %s145, %s146
      %p150 = pneg %p144
      %p151 = scmp.eq.s32.totalorder %s29, 3
      %p152 = por %p150, %p151
      %p153 = scmp.ne.s32.totalorder %s145, %s148
      %p154 = scmp.eq.s32.totalorder %s29, 0
      %p155 = por %p153, %p154
      %p156 = scmp.ne.s32.totalorder %s145, %s148
      %p157 = scmp.eq.s32.totalorder %s34, 3
      %p158 = por %p156, %p157
      %p159 = scmp.ne.s32.totalorder %s148, %s149
      %p160 = scmp.eq.s32.totalorder %s34, 0
      %p161 = por %p159, %p160
      %p162 = scmp.ne.s32.totalorder %s148, %s149
      %p163 = scmp.eq.s32.totalorder %s35, 3
      %p164 = por %p162, %p163
      %p166 = scmp.ne.s32.totalorder %s149, %s165
      %p167 = scmp.eq.s32.totalorder %s35, 0
      %p168 = por %p166, %p167
      %s169 = ssub.s32 %s37, %s44
      %p170 = scmp.eq.s32.totalorder %s169, 0
      %s172 = sadd.s32 %s171, 1
      %s173 = scalar_select %p170, %s171, %s172
      %p176 = pneg %p170
      %p177 = scmp.eq.s32.totalorder %s29, 3
      %p178 = por %p176, %p177
      %p179 = scmp.ne.s32.totalorder %s171, %s174
      %p180 = scmp.eq.s32.totalorder %s29, 0
      %p181 = por %p179, %p180
      %p182 = scmp.ne.s32.totalorder %s171, %s174
      %p183 = scmp.eq.s32.totalorder %s34, 3
      %p184 = por %p182, %p183
      %p185 = scmp.ne.s32.totalorder %s174, %s175
      %p186 = scmp.eq.s32.totalorder %s34, 0
      %p187 = por %p185, %p186
      %p188 = scmp.ne.s32.totalorder %s174, %s175
      %p189 = scmp.eq.s32.totalorder %s35, 3
      %p190 = por %p188, %p189
      %p192 = scmp.ne.s32.totalorder %s175, %s191
      %p193 = scmp.eq.s32.totalorder %s35, 0
      %p194 = por %p192, %p193
      %s195 = ssub.s32 %s37, %s44
      %p196 = scmp.eq.s32.totalorder %s195, 0
      %s198 = sadd.s32 %s197, 1
      %s199 = scalar_select %p196, %s197, %s198
      %p202 = pneg %p196
      %p203 = scmp.eq.s32.totalorder %s29, 3
      %p204 = por %p202, %p203
      %p205 = scmp.ne.s32.totalorder %s197, %s200
      %p206 = scmp.eq.s32.totalorder %s29, 0
      %p207 = por %p205, %p206
      %p208 = scmp.ne.s32.totalorder %s197, %s200
      %p209 = scmp.eq.s32.totalorder %s34, 3
      %p210 = por %p208, %p209
      %p211 = scmp.ne.s32.totalorder %s200, %s201
      %p212 = scmp.eq.s32.totalorder %s34, 0
      %p213 = por %p211, %p212
      %p214 = scmp.ne.s32.totalorder %s200, %s201
      %p215 = scmp.eq.s32.totalorder %s35, 3
      %p216 = por %p214, %p215
      %p218 = scmp.ne.s32.totalorder %s201, %s217
      %p219 = scmp.eq.s32.totalorder %s35, 0
      %p220 = por %p218, %p219
      %s221 = ssub.s32 %s37, %s44
      %p222 = scmp.eq.s32.totalorder %s221, 0
      %s224 = sadd.s32 %s223, 1
      %s225 = scalar_select %p222, %s223, %s224
      %p228 = pneg %p222
      %p229 = scmp.eq.s32.totalorder %s29, 3
      %p230 = por %p228, %p229
      %p231 = scmp.ne.s32.totalorder %s223, %s226
      %p232 = scmp.eq.s32.totalorder %s29, 0
      %p233 = por %p231, %p232
      %p234 = scmp.ne.s32.totalorder %s223, %s226
      %p235 = scmp.eq.s32.totalorder %s34, 3
      %p236 = por %p234, %p235
      %p237 = scmp.ne.s32.totalorder %s226, %s227
      %p238 = scmp.eq.s32.totalorder %s34, 0
      %p239 = por %p237, %p238
      %p240 = scmp.ne.s32.totalorder %s226, %s227
      %p241 = scmp.eq.s32.totalorder %s35, 3
      %p242 = por %p240, %p241
      %p244 = scmp.ne.s32.totalorder %s227, %s243
      %p245 = scmp.eq.s32.totalorder %s35, 0
      %p246 = por %p244, %p245
      %s247 = ssub.s32 %s37, %s44
      %p248 = scmp.eq.s32.totalorder %s247, 0
      %s250 = sadd.s32 %s249, 1
      %s251 = scalar_select %p248, %s249, %s250
      %p254 = pneg %p248
      %p255 = scmp.eq.s32.totalorder %s29, 3
      %p256 = por %p254, %p255
      %p257 = scmp.ne.s32.totalorder %s249, %s252
      %p258 = scmp.eq.s32.totalorder %s29, 0
      %p259 = por %p257, %p258
      %p260 = scmp.ne.s32.totalorder %s249, %s252
      %p261 = scmp.eq.s32.totalorder %s34, 3
      %p262 = por %p260, %p261
      %p263 = scmp.ne.s32.totalorder %s252, %s253
      %p264 = scmp.eq.s32.totalorder %s34, 0
      %p265 = por %p263, %p264
      %p266 = scmp.ne.s32.totalorder %s252, %s253
      %p267 = scmp.eq.s32.totalorder %s35, 3
      %p268 = por %p266, %p267
      %p270 = scmp.ne.s32.totalorder %s253, %s269
      %p271 = scmp.eq.s32.totalorder %s35, 0
      %p272 = por %p270, %p271
      %s273 = ssub.s32 %s37, %s44
      %p274 = scmp.eq.s32.totalorder %s273, 0
      %s276 = sadd.s32 %s275, 1
      %s277 = scalar_select %p274, %s275, %s276
      %p280 = pneg %p274
      %p281 = scmp.eq.s32.totalorder %s29, 3
      %p282 = por %p280, %p281
      %p283 = scmp.ne.s32.totalorder %s275, %s278
      %p284 = scmp.eq.s32.totalorder %s29, 0
      %p285 = por %p283, %p284
      %p286 = scmp.ne.s32.totalorder %s275, %s278
      %p287 = scmp.eq.s32.totalorder %s34, 3
      %p288 = por %p286, %p287
      %p289 = scmp.ne.s32.totalorder %s278, %s279
      %p290 = scmp.eq.s32.totalorder %s34, 0
      %p291 = por %p289, %p290
      %p292 = scmp.ne.s32.totalorder %s278, %s279
      %p293 = scmp.eq.s32.totalorder %s35, 3
      %p294 = por %p292, %p293
      %p296 = scmp.ne.s32.totalorder %s279, %s295
      %p297 = scmp.eq.s32.totalorder %s35, 0
      %p298 = por %p296, %p297
      %s299 = ssub.s32 %s37, %s44
      %p300 = scmp.eq.s32.totalorder %s299, 0
      %s302 = sadd.s32 %s301, 1
      %s303 = scalar_select %p300, %s301, %s302
      %p306 = pneg %p300
      %p307 = scmp.eq.s32.totalorder %s29, 3
      %p308 = por %p306, %p307
      %p309 = scmp.ne.s32.totalorder %s301, %s304
      %p310 = scmp.eq.s32.totalorder %s29, 0
      %p311 = por %p309, %p310
      %p312 = scmp.ne.s32.totalorder %s301, %s304
      %p313 = scmp.eq.s32.totalorder %s34, 3
      %p314 = por %p312, %p313
      %p315 = scmp.ne.s32.totalorder %s304, %s305
      %p316 = scmp.eq.s32.totalorder %s34, 0
      %p317 = por %p315, %p316
      %p318 = scmp.ne.s32.totalorder %s304, %s305
      %p319 = scmp.eq.s32.totalorder %s35, 3
      %p320 = por %p318, %p319
      %p322 = scmp.ne.s32.totalorder %s305, %s321
      %p323 = scmp.eq.s32.totalorder %s35, 0
      %p324 = por %p322, %p323
      %s325 = ssub.s32 %s37, %s44
      %p326 = scmp.eq.s32.totalorder %s325, 0
      %s328 = sadd.s32 %s327, 1
      %s329 = scalar_select %p326, %s327, %s328
      %p332 = pneg %p326
      %p333 = scmp.eq.s32.totalorder %s29, 3
      %p334 = por %p332, %p333
      %p335 = scmp.ne.s32.totalorder %s327, %s330
      %p336 = scmp.eq.s32.totalorder %s29, 0
      %p337 = por %p335, %p336
      %p338 = scmp.ne.s32.totalorder %s327, %s330
      %p339 = scmp.eq.s32.totalorder %s34, 3
      %p340 = por %p338, %p339
      %p341 = scmp.ne.s32.totalorder %s330, %s331
      %p342 = scmp.eq.s32.totalorder %s34, 0
      %p343 = por %p341, %p342
      %p344 = scmp.ne.s32.totalorder %s330, %s331
      %p345 = scmp.eq.s32.totalorder %s35, 3
      %p346 = por %p344, %p345
      %p348 = scmp.ne.s32.totalorder %s331, %s347
      %p349 = scmp.eq.s32.totalorder %s35, 0
      %p350 = por %p348, %p349
      %s351 = ssub.s32 %s37, %s44
      %p352 = scmp.eq.s32.totalorder %s351, 0
      %s354 = sadd.s32 %s353, 1
      %s355 = scalar_select %p352, %s353, %s354
      %p358 = pneg %p352
      %p359 = scmp.eq.s32.totalorder %s29, 3
      %p360 = por %p358, %p359
      %p361 = scmp.ne.s32.totalorder %s353, %s356
      %p362 = scmp.eq.s32.totalorder %s29, 0
      %p363 = por %p361, %p362
      %p364 = scmp.ne.s32.totalorder %s353, %s356
      %p365 = scmp.eq.s32.totalorder %s34, 3
      %p366 = por %p364, %p365
      %p367 = scmp.ne.s32.totalorder %s356, %s357
      %p368 = scmp.eq.s32.totalorder %s34, 0
      %p369 = por %p367, %p368
      %p370 = scmp.ne.s32.totalorder %s356, %s357
      %p371 = scmp.eq.s32.totalorder %s35, 3
      %p372 = por %p370, %p371
      %p374 = scmp.ne.s32.totalorder %s357, %s373
      %p375 = scmp.eq.s32.totalorder %s35, 0
      %p376 = por %p374, %p375
      %s377 = ssub.s32 %s37, %s44
      %p378 = scmp.eq.s32.totalorder %s377, 0
      %s380 = sadd.s32 %s379, 1
      %s381 = scalar_select %p378, %s379, %s380
      %p384 = pneg %p378
      %p385 = scmp.eq.s32.totalorder %s29, 3
      %p386 = por %p384, %p385
      %p387 = scmp.ne.s32.totalorder %s379, %s382
      %p388 = scmp.eq.s32.totalorder %s29, 0
      %p389 = por %p387, %p388
      %p390 = scmp.ne.s32.totalorder %s379, %s382
      %p391 = scmp.eq.s32.totalorder %s34, 3
      %p392 = por %p390, %p391
      %p393 = scmp.ne.s32.totalorder %s382, %s383
      %p394 = scmp.eq.s32.totalorder %s34, 0
      %p395 = por %p393, %p394
      %p396 = scmp.ne.s32.totalorder %s382, %s383
      %p397 = scmp.eq.s32.totalorder %s35, 3
      %p398 = por %p396, %p397
      %p400 = scmp.ne.s32.totalorder %s383, %s399
      %p401 = scmp.eq.s32.totalorder %s35, 0
      %p402 = por %p400, %p401
      %s403 = ssub.s32 %s37, %s44
      %p404 = scmp.eq.s32.totalorder %s403, 0
      %s406 = sadd.s32 %s405, 1
      %s407 = scalar_select %p404, %s405, %s406
      %p410 = pneg %p404
      %p411 = scmp.eq.s32.totalorder %s29, 3
      %p412 = por %p410, %p411
      %p413 = scmp.ne.s32.totalorder %s405, %s408
      %p414 = scmp.eq.s32.totalorder %s29, 0
      %p415 = por %p413, %p414
      %p416 = scmp.ne.s32.totalorder %s405, %s408
      %p417 = scmp.eq.s32.totalorder %s34, 3
      %p418 = por %p416, %p417
      %p419 = scmp.ne.s32.totalorder %s408, %s409
      %p420 = scmp.eq.s32.totalorder %s34, 0
      %p421 = por %p419, %p420
      %p422 = scmp.ne.s32.totalorder %s408, %s409
      %p423 = scmp.eq.s32.totalorder %s35, 3
      %p424 = por %p422, %p423
      %p426 = scmp.ne.s32.totalorder %s409, %s425
      %p427 = scmp.eq.s32.totalorder %s35, 0
      %p428 = por %p426, %p427
      %s429 = ssub.s32 %s37, %s44
      %p430 = scmp.eq.s32.totalorder %s429, 0
      %s432 = sadd.s32 %s431, 1
      %s433 = scalar_select %p430, %s431, %s432
      %p436 = pneg %p430
      %p437 = scmp.eq.s32.totalorder %s29, 3
      %p438 = por %p436, %p437
      %p439 = scmp.ne.s32.totalorder %s431, %s434
      %p440 = scmp.eq.s32.totalorder %s29, 0
      %p441 = por %p439, %p440
      %p442 = scmp.ne.s32.totalorder %s431, %s434
      %p443 = scmp.eq.s32.totalorder %s34, 3
      %p444 = por %p442, %p443
      %p445 = scmp.ne.s32.totalorder %s434, %s435
      %p446 = scmp.eq.s32.totalorder %s34, 0
      %p447 = por %p445, %p446
      %p448 = scmp.ne.s32.totalorder %s434, %s435
      %p449 = scmp.eq.s32.totalorder %s35, 3
      %p450 = por %p448, %p449
      %p452 = scmp.ne.s32.totalorder %s435, %s451
      %p453 = scmp.eq.s32.totalorder %s35, 0
      %p454 = por %p452, %p453
      %s455 = ssub.s32 %s36, %s48
      %p456 = scmp.eq.s32.totalorder %s455, 0
      %s458 = sadd.s32 %s457, 1
      %s459 = scalar_select %p456, %s457, %s458
      %p462 = pneg %p456
      %p463 = scmp.eq.s32.totalorder %s29, 3
      %p464 = por %p462, %p463
      %p465 = scmp.ne.s32.totalorder %s457, %s460
      %p466 = scmp.eq.s32.totalorder %s29, 0
      %p467 = por %p465, %p466
      %p468 = scmp.ne.s32.totalorder %s457, %s460
      %p469 = scmp.eq.s32.totalorder %s34, 3
      %p470 = por %p468, %p469
      %p471 = scmp.ne.s32.totalorder %s460, %s461
      %p472 = scmp.eq.s32.totalorder %s34, 0
      %p473 = por %p471, %p472
      %p474 = scmp.ne.s32.totalorder %s460, %s461
      %p475 = scmp.eq.s32.totalorder %s35, 3
      %p476 = por %p474, %p475
      %p478 = scmp.ne.s32.totalorder %s461, %s477
      %p479 = scmp.eq.s32.totalorder %s35, 0
      %p480 = por %p478, %p479
      %p481 = scmp.le.s32.totalorder 1, %s29
      %p482 = scmp.lt.s32.totalorder %s29, 5
      %p483 = pnand %p481, %p482
      %p484 = pneg %p483
      // Predicated region
      $region9: #{tpu_custom_call.1} parent=5 // pred_check
        _
      $region10: #{tpu_custom_call.1} parent=5 // pred_check_branch
        %486 = sbr.rel (%p483) target = $region12
      $region11: #{tpu_custom_call.1} parent=5 // pred_region
        %s487 = ssub.s32 %s29, 1
        // Predicated region
        $region13: #{tpu_custom_call.1} parent=11 // pred_check
          %p488 = pneg %p114
        $region14: #{tpu_custom_call.1} parent=11 // pred_check_branch
          %490 = sbr.rel (%p488) target = $region16
        $region15: #{tpu_custom_call.1} parent=11 // pred_region
          _
        $region16: #{tpu_custom_call.1} parent=11 // pred_fallthru
          _
        // Predicated region
        $region17: #{tpu_custom_call.1} parent=11 // pred_check
          %p491 = pneg %p135
        $region18: #{tpu_custom_call.1} parent=11 // pred_check_branch
          %493 = sbr.rel (%p491) target = $region20
        $region19: #{tpu_custom_call.1} parent=11 // pred_region
          %495 = vsyncadd [#allocation7], 0
          %s497 = sshll.u32 %s3, 4
          %s498 = int_to_ptr.hbm [resolvable:$true] %s497
          %s499 = sshll.u32 [#allocation6], 4
          %s500 = int_to_ptr.vmem [resolvable:$true] %s499
          %502 = dma.hbm_to_vmem [thread:$0]  %s498, 16, %s500, [#allocation7]
        $region20: #{tpu_custom_call.1} parent=11 // pred_fallthru
          _
      $region12: #{tpu_custom_call.1} parent=5 // pred_fallthru
        _
      %p503 = scmp.lt.s32.totalorder %s29, 4
      // Predicated region
      $region21: #{tpu_custom_call.1} parent=5 // pred_check
        %p504 = pneg %p503
      $region22: #{tpu_custom_call.1} parent=5 // pred_check_branch
        %506 = sbr.rel (%p504) target = $region24
      $region23: #{tpu_custom_call.1} parent=5 // pred_region
        // Predicated region
        $region25: #{tpu_custom_call.1} parent=23 // pred_check
          %p507 = pneg %p61
        $region26: #{tpu_custom_call.1} parent=23 // pred_check_branch
          %509 = sbr.rel (%p507) target = $region28
        $region27: #{tpu_custom_call.1} parent=23 // pred_region
          %p510 = scmp.lt.s32.totalorder %s36, 1
          %s511 = scalar_select %p510, %s36, 1
          %s512 = smul.addr %s511, 2
          %s513 = smul.addr %s512, 8
          %s514 = scalar_lea.vmem %s0, %s513
        $region28: #{tpu_custom_call.1} parent=23 // pred_fallthru
          _
        // Predicated region
        $region29: #{tpu_custom_call.1} parent=23 // pred_check
          %p515 = pneg %p87
        $region30: #{tpu_custom_call.1} parent=23 // pred_check_branch
          %517 = sbr.rel (%p515) target = $region32
        $region31: #{tpu_custom_call.1} parent=23 // pred_region
          %s518 = sand.u32 %s29, 1
          %s519 = scalar_lea.sflag [#allocation4], %s518
          %s520 = sand.u32 %s77, 1
          %s521 = scalar_lea.vmem [#allocation3], %s520
          %523 = vsyncadd %s519, 0
          %s524 = scalar_lea.hbm %s1, %s36
          %s526 = sshll.u32 %s524, 4
          %s527 = int_to_ptr.hbm [resolvable:$true] %s526
          %s528 = sshll.u32 %s521, 4
          %s529 = int_to_ptr.vmem [resolvable:$true] %s528
          %531 = dma.hbm_to_vmem [thread:$0]  %s527, 16, %s529, %s519
        $region32: #{tpu_custom_call.1} parent=23 // pred_fallthru
          _
        // Predicated region
        $region33: #{tpu_custom_call.1} parent=23 // pred_check
          %p532 = pneg %p155
        $region34: #{tpu_custom_call.1} parent=23 // pred_check_branch
          %534 = sbr.rel (%p532) target = $region36
        $region35: #{tpu_custom_call.1} parent=23 // pred_region
          %p535 = scmp.lt.s32.totalorder %s37, 1
          %s536 = scalar_select %p535, %s37, 1
          %s537 = smul.addr %s536, 4
          %s538 = smul.addr %s537, 4
          %s539 = scalar_lea.vmem %s4, %s538
        $region36: #{tpu_custom_call.1} parent=23 // pred_fallthru
          _
        // Predicated region
        $region37: #{tpu_custom_call.1} parent=23 // pred_check
          %p540 = pneg %p181
        $region38: #{tpu_custom_call.1} parent=23 // pred_check_branch
          %542 = sbr.rel (%p540) target = $region40
        $region39: #{tpu_custom_call.1} parent=23 // pred_region
          %p543 = scmp.lt.s32.totalorder %s37, 1
          %s544 = scalar_select %p543, %s37, 1
          %s545 = scalar_lea.vmem %s5, %s544
        $region40: #{tpu_custom_call.1} parent=23 // pred_fallthru
          _
        // Predicated region
        $region41: #{tpu_custom_call.1} parent=23 // pred_check
          %p546 = pneg %p207
        $region42: #{tpu_custom_call.1} parent=23 // pred_check_branch
          %548 = sbr.rel (%p546) target = $region44
        $region43: #{tpu_custom_call.1} parent=23 // pred_region
          %p549 = scmp.lt.s32.totalorder %s37, 1
          %s550 = scalar_select %p549, %s37, 1
          %s551 = smul.addr %s550, 4
          %s552 = smul.addr %s551, 4
          %s553 = scalar_lea.vmem %s6, %s552
        $region44: #{tpu_custom_call.1} parent=23 // pred_fallthru
          _
        // Predicated region
        $region45: #{tpu_custom_call.1} parent=23 // pred_check
          %p554 = pneg %p233
        $region46: #{tpu_custom_call.1} parent=23 // pred_check_branch
          %556 = sbr.rel (%p554) target = $region48
        $region47: #{tpu_custom_call.1} parent=23 // pred_region
          %p557 = scmp.lt.s32.totalorder %s37, 1
          %s558 = scalar_select %p557, %s37, 1
          %s559 = scalar_lea.vmem %s7, %s558
        $region48: #{tpu_custom_call.1} parent=23 // pred_fallthru
          _
        // Predicated region
        $region49: #{tpu_custom_call.1} parent=23 // pred_check
          %p560 = pneg %p259
        $region50: #{tpu_custom_call.1} parent=23 // pred_check_branch
          %562 = sbr.rel (%p560) target = $region52
        $region51: #{tpu_custom_call.1} parent=23 // pred_region
          %p563 = scmp.lt.s32.totalorder %s37, 1
          %s564 = scalar_select %p563, %s37, 1
          %s565 = scalar_lea.vmem %s8, %s564
        $region52: #{tpu_custom_call.1} parent=23 // pred_fallthru
          _
        // Predicated region
        $region53: #{tpu_custom_call.1} parent=23 // pred_check
          %p566 = pneg %p285
        $region54: #{tpu_custom_call.1} parent=23 // pred_check_branch
          %568 = sbr.rel (%p566) target = $region56
        $region55: #{tpu_custom_call.1} parent=23 // pred_region
          %s569 = sand.u32 %s29, 1
          %s570 = scalar_lea.sflag [#allocation4], %s569
          %s571 = sand.u32 %s275, 1
          %s572 = scalar_lea.vmem [#allocation8], %s571
          %574 = vsyncadd %s570, 0
          %s575 = scalar_lea.hbm %s9, %s37
          %s577 = sshll.u32 %s575, 4
          %s578 = int_to_ptr.hbm [resolvable:$true] %s577
          %s579 = sshll.u32 %s572, 4
          %s580 = int_to_ptr.vmem [resolvable:$true] %s579
          %582 = dma.hbm_to_vmem [thread:$0]  %s578, 16, %s580, %s570
        $region56: #{tpu_custom_call.1} parent=23 // pred_fallthru
          _
        // Predicated region
        $region57: #{tpu_custom_call.1} parent=23 // pred_check
          %p583 = pneg %p311
        $region58: #{tpu_custom_call.1} parent=23 // pred_check_branch
          %585 = sbr.rel (%p583) target = $region60
        $region59: #{tpu_custom_call.1} parent=23 // pred_region
          %s586 = sand.u32 %s29, 1
          %s587 = scalar_lea.sflag [#allocation4], %s586
          %s588 = sand.u32 %s301, 1
          %s589 = smul.addr %s588, 16
          %s590 = scalar_lea.vmem [#allocation9], %s589
          %592 = vsyncadd %s587, 0
          %s593 = smul.addr %s37, 4
          %s594 = smul.addr %s593, 4
          %s595 = scalar_lea.hbm %s10, %s594
          %s596 = sshll.u32 %s595, 4
          %s597 = int_to_ptr.hbm [resolvable:$true] %s596
          %s598 = sshll.u32 %s590, 4
          %s599 = int_to_ptr.vmem [resolvable:$true] %s598
          %604 = dma.hbm_to_vmem [thread:$0]  %s597, 256, %s599, %s587, 64, 64, 4
        $region60: #{tpu_custom_call.1} parent=23 // pred_fallthru
          _
        // Predicated region
        $region61: #{tpu_custom_call.1} parent=23 // pred_check
          %p605 = pneg %p337
        $region62: #{tpu_custom_call.1} parent=23 // pred_check_branch
          %607 = sbr.rel (%p605) target = $region64
        $region63: #{tpu_custom_call.1} parent=23 // pred_region
          %p608 = scmp.lt.s32.totalorder %s37, 1
          %s609 = scalar_select %p608, %s37, 1
          %s610 = scalar_lea.vmem %s11, %s609
        $region64: #{tpu_custom_call.1} parent=23 // pred_fallthru
          _
        // Predicated region
        $region65: #{tpu_custom_call.1} parent=23 // pred_check
          %p611 = pneg %p363
        $region66: #{tpu_custom_call.1} parent=23 // pred_check_branch
          %613 = sbr.rel (%p611) target = $region68
        $region67: #{tpu_custom_call.1} parent=23 // pred_region
          %p614 = scmp.lt.s32.totalorder %s37, 1
          %s615 = scalar_select %p614, %s37, 1
          %s616 = smul.addr %s615, 8
          %s617 = smul.addr %s616, 4
          %s618 = scalar_lea.vmem %s12, %s617
        $region68: #{tpu_custom_call.1} parent=23 // pred_fallthru
          _
        // Predicated region
        $region69: #{tpu_custom_call.1} parent=23 // pred_check
          %p619 = pneg %p389
        $region70: #{tpu_custom_call.1} parent=23 // pred_check_branch
          %621 = sbr.rel (%p619) target = $region72
        $region71: #{tpu_custom_call.1} parent=23 // pred_region
          %p622 = scmp.lt.s32.totalorder %s37, 1
          %s623 = scalar_select %p622, %s37, 1
          %s624 = scalar_lea.vmem %s13, %s623
        $region72: #{tpu_custom_call.1} parent=23 // pred_fallthru
          _
        // Predicated region
        $region73: #{tpu_custom_call.1} parent=23 // pred_check
          %p625 = pneg %p415
        $region74: #{tpu_custom_call.1} parent=23 // pred_check_branch
          %627 = sbr.rel (%p625) target = $region76
        $region75: #{tpu_custom_call.1} parent=23 // pred_region
          %p628 = scmp.lt.s32.totalorder %s37, 1
          %s629 = scalar_select %p628, %s37, 1
          %s630 = scalar_lea.vmem %s14, %s629
        $region76: #{tpu_custom_call.1} parent=23 // pred_fallthru
          _
        // Predicated region
        $region77: #{tpu_custom_call.1} parent=23 // pred_check
          %p631 = pneg %p441
        $region78: #{tpu_custom_call.1} parent=23 // pred_check_branch
          %633 = sbr.rel (%p631) target = $region80
        $region79: #{tpu_custom_call.1} parent=23 // pred_region
          %s634 = sand.u32 %s29, 1
          %s635 = scalar_lea.sflag [#allocation4], %s634
          %s636 = sand.u32 %s431, 1
          %s637 = scalar_lea.vmem [#allocation10], %s636
          %639 = vsyncadd %s635, 0
          %s640 = scalar_lea.hbm %s15, %s37
          %s642 = sshll.u32 %s640, 4
          %s643 = int_to_ptr.hbm [resolvable:$true] %s642
          %s644 = sshll.u32 %s637, 4
          %s645 = int_to_ptr.vmem [resolvable:$true] %s644
          %647 = dma.hbm_to_vmem [thread:$0]  %s643, 16, %s645, %s635
        $region80: #{tpu_custom_call.1} parent=23 // pred_fallthru
          _
      $region24: #{tpu_custom_call.1} parent=5 // pred_fallthru
        _
      %p648 = scmp.le.s32.totalorder 1, %s29
      %p649 = scmp.lt.s32.totalorder %s29, 5
      %p650 = pnand %p648, %p649
      %p651 = pneg %p650
      // Predicated region
      $region81: #{tpu_custom_call.1} parent=5 // pred_check
        _
      $region82: #{tpu_custom_call.1} parent=5 // pred_check_branch
        %653 = sbr.rel (%p650) target = $region84
      $region83: #{tpu_custom_call.1} parent=5 // pred_region
        %s654 = ssub.s32 %s29, 1
        %s655 = sand.u32 %s34, 1
        %s656 = scalar_lea.sflag [#allocation4], %s655
        %s657 = sand.u32 %s80, 1
        %s658 = scalar_lea.vmem [#allocation3], %s657
        // Predicated region
        $region85: #{tpu_custom_call.1} parent=83 // pred_check
          %p659 = pneg %p93
        $region86: #{tpu_custom_call.1} parent=83 // pred_check_branch
          %661 = sbr.rel (%p659) target = $region88
        $region87: #{tpu_custom_call.1} parent=83 // pred_region
          %663 = dma.done %s656, 16
        $region88: #{tpu_custom_call.1} parent=83 // pred_fallthru
          _
        // Predicated region
        $region89: #{tpu_custom_call.1} parent=83 // pred_check
          %p664 = pneg %p135
        $region90: #{tpu_custom_call.1} parent=83 // pred_check_branch
          %666 = sbr.rel (%p664) target = $region92
        $region91: #{tpu_custom_call.1} parent=83 // pred_region
          %668 = dma.done [#allocation7], 16
        $region92: #{tpu_custom_call.1} parent=83 // pred_fallthru
          _
        %s669 = sand.u32 %s34, 1
        %s670 = scalar_lea.sflag [#allocation4], %s669
        %s671 = sand.u32 %s278, 1
        %s672 = scalar_lea.vmem [#allocation8], %s671
        // Predicated region
        $region93: #{tpu_custom_call.1} parent=83 // pred_check
          %p673 = pneg %p291
        $region94: #{tpu_custom_call.1} parent=83 // pred_check_branch
          %675 = sbr.rel (%p673) target = $region96
        $region95: #{tpu_custom_call.1} parent=83 // pred_region
          %677 = dma.done %s670, 16
        $region96: #{tpu_custom_call.1} parent=83 // pred_fallthru
          _
        %s678 = sand.u32 %s34, 1
        %s679 = scalar_lea.sflag [#allocation4], %s678
        %s680 = sand.u32 %s304, 1
        %s681 = smul.addr %s680, 16
        %s682 = scalar_lea.vmem [#allocation9], %s681
        // Predicated region
        $region97: #{tpu_custom_call.1} parent=83 // pred_check
          %p683 = pneg %p317
        $region98: #{tpu_custom_call.1} parent=83 // pred_check_branch
          %685 = sbr.rel (%p683) target = $region100
        $region99: #{tpu_custom_call.1} parent=83 // pred_region
          %687 = dma.done %s679, 256
        $region100: #{tpu_custom_call.1} parent=83 // pred_fallthru
          _
        %s688 = sand.u32 %s34, 1
        %s689 = scalar_lea.sflag [#allocation4], %s688
        %s690 = sand.u32 %s434, 1
        %s691 = scalar_lea.vmem [#allocation10], %s690
        // Predicated region
        $region101: #{tpu_custom_call.1} parent=83 // pred_check
          %p692 = pneg %p447
        $region102: #{tpu_custom_call.1} parent=83 // pred_check_branch
          %694 = sbr.rel (%p692) target = $region104
        $region103: #{tpu_custom_call.1} parent=83 // pred_region
          %696 = dma.done %s689, 16
        $region104: #{tpu_custom_call.1} parent=83 // pred_fallthru
          _
        %p697 = scmp.lt.s32.totalorder %s38, 1
        %s698 = scalar_select %p697, %s38, 1
        %s699 = smul.addr %s698, 2
        %s700 = smul.addr %s699, 8
        %s701 = scalar_lea.vmem %s0, %s700
        %p702 = pneg %p67
        %p703 = pneg %p64
        %s704 = sand.u32 %s34, 1
        %s705 = scalar_lea.sflag [#allocation4], %s704
        %s706 = sand.u32 %s80, 1
        %s707 = scalar_lea.vmem [#allocation3], %s706
        %p708 = pneg %p93
        %p709 = pneg %p90
        %p710 = pneg %p114
        %p711 = pneg %p111
        %p712 = pneg %p135
        %p713 = pneg %p132
        %p714 = scmp.lt.s32.totalorder %s39, 1
        %s715 = scalar_select %p714, %s39, 1
        %s716 = smul.addr %s715, 4
        %s717 = smul.addr %s716, 4
        %s718 = scalar_lea.vmem %s4, %s717
        %p719 = pneg %p161
        %p720 = pneg %p158
        %p721 = scmp.lt.s32.totalorder %s39, 1
        %s722 = scalar_select %p721, %s39, 1
        %s723 = scalar_lea.vmem %s5, %s722
        %p724 = pneg %p187
        %p725 = pneg %p184
        %p726 = scmp.lt.s32.totalorder %s39, 1
        %s727 = scalar_select %p726, %s39, 1
        %s728 = smul.addr %s727, 4
        %s729 = smul.addr %s728, 4
        %s730 = scalar_lea.vmem %s6, %s729
        %p731 = pneg %p213
        %p732 = pneg %p210
        %p733 = scmp.lt.s32.totalorder %s39, 1
        %s734 = scalar_select %p733, %s39, 1
        %s735 = scalar_lea.vmem %s7, %s734
        %p736 = pneg %p239
        %p737 = pneg %p236
        %p738 = scmp.lt.s32.totalorder %s39, 1
        %s739 = scalar_select %p738, %s39, 1
        %s740 = scalar_lea.vmem %s8, %s739
        %p741 = pneg %p265
        %p742 = pneg %p262
        %s743 = sand.u32 %s34, 1
        %s744 = scalar_lea.sflag [#allocation4], %s743
        %s745 = sand.u32 %s278, 1
        %s746 = scalar_lea.vmem [#allocation8], %s745
        %p747 = pneg %p291
        %p748 = pneg %p288
        %s749 = sand.u32 %s34, 1
        %s750 = scalar_lea.sflag [#allocation4], %s749
        %s751 = sand.u32 %s304, 1
        %s752 = smul.addr %s751, 16
        %s753 = scalar_lea.vmem [#allocation9], %s752
        %p754 = pneg %p317
        %p755 = pneg %p314
        %p756 = scmp.lt.s32.totalorder %s39, 1
        %s757 = scalar_select %p756, %s39, 1
        %s758 = scalar_lea.vmem %s11, %s757
        %p759 = pneg %p343
        %p760 = pneg %p340
        %p761 = scmp.lt.s32.totalorder %s39, 1
        %s762 = scalar_select %p761, %s39, 1
        %s763 = smul.addr %s762, 8
        %s764 = smul.addr %s763, 4
        %s765 = scalar_lea.vmem %s12, %s764
        %p766 = pneg %p369
        %p767 = pneg %p366
        %p768 = scmp.lt.s32.totalorder %s39, 1
        %s769 = scalar_select %p768, %s39, 1
        %s770 = scalar_lea.vmem %s13, %s769
        %p771 = pneg %p395
        %p772 = pneg %p392
        %p773 = scmp.lt.s32.totalorder %s39, 1
        %s774 = scalar_select %p773, %s39, 1
        %s775 = scalar_lea.vmem %s14, %s774
        %p776 = pneg %p421
        %p777 = pneg %p418
        %s778 = sand.u32 %s34, 1
        %s779 = scalar_lea.sflag [#allocation4], %s778
        %s780 = sand.u32 %s434, 1
        %s781 = scalar_lea.vmem [#allocation10], %s780
        %p782 = pneg %p447
        %p783 = pneg %p444
        %p784 = pneg %p473
        %p785 = pneg %p470
        %s786 = sand.u32 %s460, 1
        %s787 = scalar_lea.sflag [#allocation5], %s786
        %s788 = sand.u32 %s460, 1
        %s789 = scalar_lea.vmem [#allocation11], %s788
        %p790 = scmp.lt.s32.totalorder %s38, 1
        %s791 = scalar_select %p790, %s38, 1
        %s792 = smul.addr %s791, 2
        %s793 = smul.addr %s792, 8
        %s794 = scalar_lea.vmem %s0, %s793
        %p795 = scmp.lt.s32.totalorder %s39, 1
        %s796 = scalar_select %p795, %s39, 1
        %s797 = smul.addr %s796, 4
        %s798 = smul.addr %s797, 4
        %s799 = scalar_lea.vmem %s4, %s798
        %p800 = scmp.lt.s32.totalorder %s39, 1
        %s801 = scalar_select %p800, %s39, 1
        %s802 = scalar_lea.vmem %s5, %s801
        %p803 = scmp.lt.s32.totalorder %s39, 1
        %s804 = scalar_select %p803, %s39, 1
        %s805 = smul.addr %s804, 4
        %s806 = smul.addr %s805, 4
        %s807 = scalar_lea.vmem %s6, %s806
        %p808 = scmp.lt.s32.totalorder %s39, 1
        %s809 = scalar_select %p808, %s39, 1
        %s810 = scalar_lea.vmem %s7, %s809
        %p811 = scmp.lt.s32.totalorder %s39, 1
        %s812 = scalar_select %p811, %s39, 1
        %s813 = scalar_lea.vmem %s8, %s812
        %p814 = scmp.lt.s32.totalorder %s39, 1
        %s815 = scalar_select %p814, %s39, 1
        %s816 = scalar_lea.vmem %s11, %s815
        %p817 = scmp.lt.s32.totalorder %s39, 1
        %s818 = scalar_select %p817, %s39, 1
        %s819 = smul.addr %s818, 8
        %s820 = smul.addr %s819, 4
        %s821 = scalar_lea.vmem %s12, %s820
        %p822 = scmp.lt.s32.totalorder %s39, 1
        %s823 = scalar_select %p822, %s39, 1
        %s824 = scalar_lea.vmem %s13, %s823
        %p825 = scmp.lt.s32.totalorder %s39, 1
        %s826 = scalar_select %p825, %s39, 1
        %s827 = scalar_lea.vmem %s14, %s826
        %p829 = scmp.eq.s32.totalorder %s39, 0
        // Predicated region
        $region105: #{tpu_custom_call.1} parent=83 // pred_check
          %p830 = pneg %p829
        $region106: #{tpu_custom_call.1} parent=83 // pred_check_branch
          %832 = sbr.rel (%p830) target = $region108
        $region107: #{tpu_custom_call.1} parent=83 // pred_region
          %v833 = vld [vmem:[%s794] sm:$0xff]
          %v834 = vld [vmem:[%s794 + $0x8] sm:$0xff]
          %v835 = vld [vmem:[%s2] sm:$0x1]
          %v836 = vld [vmem:[#allocation6] sm:$0x1]
          %vm837 = vcmask 261120
          %v838 = vsel %vm837, %v833, 0.0
          %839 = vadd.xlane.f32.xlu0 %v838
          %v840 = vpop.xlane.xlu0 %839
          %v841 = vsel %vm837, %v834, 0.0
          %842 = vadd.xlane.f32.xlu0 %v841
          %v843 = vpop.xlane.xlu0 %842
          %v844 = vrcp.pop 32.0
          %v845 = vmul.f32 32.0, %v844
          %v846 = vsub.f32 1.0, %v845
          %v847 = vmul.f32 %v844, %v846
          %v848 = vadd.f32 %v844, %v847
          %vm849 = vweird.f32 %v844
          %v850 = vsel %vm849, %v844, %v848
          %v851 = vmul.f32 %v840, %v850
          %v852 = vmul.f32 %v843, %v850
          %v853 = vsub.f32 %v833, %v851
          %v854 = vsub.f32 %v834, %v852
          %v855 = vmul.f32 %v853, %v853
          %v856 = vmul.f32 %v854, %v854
          %v857 = vsel %vm837, %v855, 0.0
          %858 = vadd.xlane.f32.xlu0 %v857
          %v859 = vpop.xlane.xlu0 %858
          %v860 = vsel %vm837, %v856, 0.0
          %861 = vadd.xlane.f32.xlu0 %v860
          %v862 = vpop.xlane.xlu0 %861
          %v863 = vmul.f32 %v859, %v850
          %v864 = vmul.f32 %v862, %v850
          %v865 = vadd.f32 %v863, 1e-12
          %v866 = vadd.f32 %v864, 1e-12
          %v867 = vrsqrt.pop %v865
          %v868 = vmul.f32 %v867, %v865
          %v869 = vmul.f32 %v868, %v867
          %v870 = vmul.f32 0.5, %v869
          %v871 = vsub.f32 1.5, %v870
          %v872 = vmul.f32 %v867, %v871
          %vm873 = vweird.f32 %v865
          %vm874 = vweird.f32 %v867
          %vm875 = vmor %vm873, %vm874
          %v876 = vsel %vm875, %v867, %v872
          %v877 = vrsqrt.pop %v866
          %v878 = vmul.f32 %v877, %v866
          %v879 = vmul.f32 %v878, %v877
          %v880 = vmul.f32 0.5, %v879
          %v881 = vsub.f32 1.5, %v880
          %v882 = vmul.f32 %v877, %v881
          %vm883 = vweird.f32 %v866
          %vm884 = vweird.f32 %v877
          %vm885 = vmor %vm883, %vm884
          %v886 = vsel %vm885, %v877, %v882
          %v887 = vmul.f32 %v853, %v876
          %v888 = vmul.f32 %v854, %v886
          %v890 = vperm.slane %v835, 0
          %v892 = vmul.f32 %v887, %v890
          %v893 = vmul.f32 %v888, %v890
          %v895 = vperm.slane %v836, 0
          %v897 = vadd.f32 %v892, %v895
          %v898 = vadd.f32 %v893, %v895
          %899 = vst.msk [vmem:[#allocation2] sm:$0xff] %vm837, %v897
          %900 = vst.msk [vmem:[#allocation2 + $0x8] sm:$0xff] %vm837, %v898
        $region108: #{tpu_custom_call.1} parent=83 // pred_fallthru
          _
        %v901 = vld [vmem:[#allocation2] sm:$0xff]
        %v902 = vld [vmem:[#allocation2 + $0x8] sm:$0xff]
        %v903 = vld [vmem:[%s658] sm:$0x1]
        %v904 = vld [vmem:[%s799] sm:$0xf]
        %v905 = vld [vmem:[%s799 + $0x4] sm:$0xf]
        %v906 = vld [vmem:[%s799 + $0x8] sm:$0xf]
        %v907 = vld [vmem:[%s799 + $0xc] sm:$0xf]
        %v908 = vpack.c.bf16 %v902, %v901
        %v909 = vld [vmem:[%s802] sm:$0x1]
        %v911 = vperm.slane %v909, 0
        %v917 = vunpack.c.l.b16 %v904
        %v918 = vunpack.c.l.b16 %v905
        %v919 = vunpack.c.l.b16 %v906
        %v920 = vunpack.c.l.b16 %v907
        %v921 = vpack.c.b16 %v918, %v917
        %v922 = vpack.c.b16 %v920, %v919
        %vm925 = vcmask 261120
        %v927 = vsel %vm925, %v908, 0
        %929 = vmatpush.bf16.msra.mxu0 0
        %930 = vmatpush.bf16.msra.mxu0 0
        %931 = vmatpush.bf16.msra.mxu0 0
        %932 = vmatpush.bf16.msra.mxu0 0
        %933 = vmatpush.bf16.msra.mxu0 0
        %934 = vmatpush.bf16.msra.mxu0 0
        %935 = vmatpush.bf16.msra.mxu0 %v922
        %936 = vmatpush.bf16.msra.mxu0 %v921
        %937 = vmatmul.bf16.gmra.mxu0 %v927
        %v938 = vpop.f32.mrf.mxu0
        %v939 = vadd.f32 %v911, %v938
        %v940 = vpop.f32.mrf.mxu0
        %v941 = vadd.f32 %v911, %v940
        %942 = vdwg.mxu0
        %945 = vrot.lane.b32.xlu0 %v939, 96
        %v946 = vpop.permute.xlu0 %945
        %947 = vrot.lane.b32.xlu0 %v941, 96
        %v948 = vpop.permute.xlu0 %947
        %951 = vxpose.xlu0.b32.start [1/16] %v946, 128
        %952 = vxpose.xlu0.b32.cont [2/16] %v948, 128
        %953 = vxpose.xlu0.b32.cont [3/16] 0.0, 128
        %954 = vxpose.xlu0.b32.cont [4/16] 0.0, 128
        %955 = vxpose.xlu0.b32.cont [5/16] 0.0, 128
        %956 = vxpose.xlu0.b32.cont [6/16] 0.0, 128
        %957 = vxpose.xlu0.b32.cont [7/16] 0.0, 128
        %958 = vxpose.xlu0.b32.cont [8/16] 0.0, 128
        %959 = vxpose.xlu0.b32.cont [9/16] 0.0, 128
        %960 = vxpose.xlu0.b32.cont [10/16] 0.0, 128
        %961 = vxpose.xlu0.b32.cont [11/16] 0.0, 128
        %962 = vxpose.xlu0.b32.cont [12/16] 0.0, 128
        %963 = vxpose.xlu0.b32.cont [13/16] 0.0, 128
        %964 = vxpose.xlu0.b32.cont [14/16] 0.0, 128
        %965 = vxpose.xlu0.b32.cont [15/16] 0.0, 128
        %966 = vxpose.xlu0.b32.end [16/16] 0.0, 128
        %v967 = vpop.trf.xlu0
        %v968 = vpop.trf.xlu0
        %v969 = vpop.trf.xlu0
        %v970 = vpop.trf.xlu0
        %v971 = vpop.trf.xlu0
        %v972 = vpop.trf.xlu0
        %v973 = vpop.trf.xlu0
        %v974 = vpop.trf.xlu0
        %v975 = vpop.trf.xlu0
        %v976 = vpop.trf.xlu0
        %v977 = vpop.trf.xlu0
        %v978 = vpop.trf.xlu0
        %v979 = vpop.trf.xlu0
        %v980 = vpop.trf.xlu0
        %v981 = vpop.trf.xlu0
        %v982 = vpop.trf.xlu0
        %p983 = scmp.lt.s32.totalorder %s39, 1
        // Predicated region
        $region109: #{tpu_custom_call.1} parent=83 // pred_check
          %p984 = pneg %p983
        $region110: #{tpu_custom_call.1} parent=83 // pred_check_branch
          %986 = sbr.rel (%p984) target = $region112
        $region111: #{tpu_custom_call.1} parent=83 // pred_region
          %v987 = vmul.f32 %v939, 0.35355338
          %v988 = vmul.f32 %v941, 0.35355338
          %v989 = vpack.c.bf16 %v988, %v987
          %v990 = vpack.c.bf16 %v967, %v967
          %v991 = vpack.c.bf16 %v941, %v939
          %v993 = vperm.slane %v903, 0
          %vm995 = vcmask 64512
          %v997 = vsel %vm995, %v989, 0
          %vm999 = vcmask 1043456
          %v1001 = vsel %vm999, %v990, 0
          %1003 = vmatpush.bf16.msra.mxu0 0
          %1004 = vmatpush.bf16.msra.mxu0 0
          %1005 = vmatpush.bf16.msra.mxu0 0
          %1006 = vmatpush.bf16.msra.mxu0 0
          %1007 = vmatpush.bf16.msra.mxu0 0
          %1008 = vmatpush.bf16.msra.mxu0 0
          %1009 = vmatpush.bf16.msra.mxu0 0
          %1010 = vmatpush.bf16.msra.mxu0 %v1001
          %1011 = vmatmul.bf16.gmra.mxu0 %v997
          %v1012 = vpop.f32.mrf.mxu0
          %v1013 = vadd.f32 %v993, %v1012
          %v1014 = vpop.f32.mrf.mxu0
          %v1015 = vadd.f32 %v993, %v1014
          %1016 = vdwg.mxu0
          %vm1017 = vcmask 130048
          %v1018 = vsel %vm1017, %v1013, -inf
          %1019 = vmax.xlane.f32.xlu0 %v1018
          %v1020 = vpop.xlane.xlu0 %1019
          %v1021 = vsel %vm1017, %v1015, -inf
          %1022 = vmax.xlane.f32.xlu0 %v1021
          %v1023 = vpop.xlane.xlu0 %1022
          %v1024 = vsub.f32 %v1013, %v1020
          %v1025 = vsub.f32 %v1015, %v1023
          %v1026 = vpack.c.bf16 %v1024, %v1024
          %v1027 = vpack.c.bf16 %v1025, %v1025
          %v1028 = vunpack.c.l.bf16 %v1026
          %v1029 = vunpack.c.l.bf16 %v1027
          %v1030 = vmul.f32 %v1028, 1.442695
          %v1031 = vpow.pop %v1030
          %v1032 = vmul.f32 %v1029, 1.442695
          %v1033 = vpow.pop %v1032
          %v1034 = vpack.c.bf16 %v1031, %v1031
          %v1035 = vpack.c.bf16 %v1033, %v1033
          %v1036 = vunpack.c.l.bf16 %v1034
          %v1037 = vunpack.c.l.bf16 %v1035
          %v1038 = vsel %vm1017, %v1036, 0.0
          %1039 = vadd.xlane.f32.xlu0 %v1038
          %v1040 = vpop.xlane.xlu0 %1039
          %v1041 = vsel %vm1017, %v1037, 0.0
          %1042 = vadd.xlane.f32.xlu0 %v1041
          %v1043 = vpop.xlane.xlu0 %1042
          %v1044 = vrcp.pop %v1040
          %v1045 = vrcp.pop %v1043
          %v1046 = vmul.f32 %v1036, %v1044
          %v1047 = vmul.f32 %v1037, %v1045
          %v1048 = vpack.c.bf16 %v1047, %v1046
          %1050 = vrot.lane.b32.xlu0 %v991, 64
          %v1051 = vpop.permute.xlu0 %1050
          %v1054 = vsel %vm1017, %v1048, 0
          %1056 = vmatpush.bf16.msra.mxu0 0
          %1057 = vmatpush.bf16.msra.mxu0 0
          %1058 = vmatpush.bf16.msra.mxu0 0
          %1059 = vmatpush.bf16.msra.mxu0 0
          %1060 = vmatpush.bf16.msra.mxu0 0
          %1061 = vmatpush.bf16.msra.mxu0 0
          %1062 = vmatpush.bf16.msra.mxu0 0
          %1063 = vmatpush.bf16.msra.mxu0 %v1051
          %1064 = vmatmul.bf16.gmra.mxu0 %v1054
          %v1065 = vpop.f32.mrf.mxu0
          %v1066 = vadd.f32 0.0, %v1065
          %v1067 = vpop.f32.mrf.mxu0
          %v1068 = vadd.f32 0.0, %v1067
          %1069 = vdwg.mxu0
          %v1070 = vpack.c.bf16 %v968, %v968
          %1072 = vrot.lane.b32.xlu0 %v989, 120
          %v1073 = vpop.permute.xlu0 %1072
          %v1075 = vsel %vm995, %v1073, 0
          %v1078 = vsel %vm999, %v1070, 0
          %1080 = vmatpush.bf16.msra.mxu0 0
          %1081 = vmatpush.bf16.msra.mxu0 0
          %1082 = vmatpush.bf16.msra.mxu0 0
          %1083 = vmatpush.bf16.msra.mxu0 0
          %1084 = vmatpush.bf16.msra.mxu0 0
          %1085 = vmatpush.bf16.msra.mxu0 0
          %1086 = vmatpush.bf16.msra.mxu0 0
          %1087 = vmatpush.bf16.msra.mxu0 %v1078
          %1088 = vmatmul.bf16.gmra.mxu0 %v1075
          %v1089 = vpop.f32.mrf.mxu0
          %v1090 = vadd.f32 %v993, %v1089
          %v1091 = vpop.f32.mrf.mxu0
          %v1092 = vadd.f32 %v993, %v1091
          %1093 = vdwg.mxu0
          %v1094 = vsel %vm1017, %v1090, -inf
          %1095 = vmax.xlane.f32.xlu0 %v1094
          %v1096 = vpop.xlane.xlu0 %1095
          %v1097 = vsel %vm1017, %v1092, -inf
          %1098 = vmax.xlane.f32.xlu0 %v1097
          %v1099 = vpop.xlane.xlu0 %1098
          %v1100 = vsub.f32 %v1090, %v1096
          %v1101 = vsub.f32 %v1092, %v1099
          %v1102 = vpack.c.bf16 %v1100, %v1100
          %v1103 = vpack.c.bf16 %v1101, %v1101
          %v1104 = vunpack.c.l.bf16 %v1102
          %v1105 = vunpack.c.l.bf16 %v1103
          %v1106 = vmul.f32 %v1104, 1.442695
          %v1107 = vpow.pop %v1106
          %v1108 = vmul.f32 %v1105, 1.442695
          %v1109 = vpow.pop %v1108
          %v1110 = vpack.c.bf16 %v1107, %v1107
          %v1111 = vpack.c.bf16 %v1109, %v1109
          %v1112 = vunpack.c.l.bf16 %v1110
          %v1113 = vunpack.c.l.bf16 %v1111
          %v1114 = vsel %vm1017, %v1112, 0.0
          %1115 = vadd.xlane.f32.xlu0 %v1114
          %v1116 = vpop.xlane.xlu0 %1115
          %v1117 = vsel %vm1017, %v1113, 0.0
          %1118 = vadd.xlane.f32.xlu0 %v1117
          %v1119 = vpop.xlane.xlu0 %1118
          %v1120 = vrcp.pop %v1116
          %v1121 = vrcp.pop %v1119
          %v1122 = vmul.f32 %v1112, %v1120
          %v1123 = vmul.f32 %v1113, %v1121
          %v1124 = vpack.c.bf16 %v1123, %v1122
          %1125 = vrot.lane.b32.xlu0 %v991, 56
          %v1126 = vpop.permute.xlu0 %1125
          %v1129 = vsel %vm1017, %v1124, 0
          %1131 = vmatpush.bf16.msra.mxu0 0
          %1132 = vmatpush.bf16.msra.mxu0 0
          %1133 = vmatpush.bf16.msra.mxu0 0
          %1134 = vmatpush.bf16.msra.mxu0 0
          %1135 = vmatpush.bf16.msra.mxu0 0
          %1136 = vmatpush.bf16.msra.mxu0 0
          %1137 = vmatpush.bf16.msra.mxu0 0
          %1138 = vmatpush.bf16.msra.mxu0 %v1126
          %1139 = vmatmul.bf16.gmra.mxu0 %v1129
          %v1140 = vpop.f32.mrf.mxu0
          %v1141 = vadd.f32 0.0, %v1140
          %v1142 = vpop.f32.mrf.mxu0
          %v1143 = vadd.f32 0.0, %v1142
          %1144 = vdwg.mxu0
          %v1145 = vpack.c.bf16 %v969, %v969
          %1146 = vrot.lane.b32.xlu0 %v989, 112
          %v1147 = vpop.permute.xlu0 %1146
          %v1149 = vsel %vm995, %v1147, 0
          %v1152 = vsel %vm999, %v1145, 0
          %1154 = vmatpush.bf16.msra.mxu0 0
          %1155 = vmatpush.bf16.msra.mxu0 0
          %1156 = vmatpush.bf16.msra.mxu0 0
          %1157 = vmatpush.bf16.msra.mxu0 0
          %1158 = vmatpush.bf16.msra.mxu0 0
          %1159 = vmatpush.bf16.msra.mxu0 0
          %1160 = vmatpush.bf16.msra.mxu0 0
          %1161 = vmatpush.bf16.msra.mxu0 %v1152
          %1162 = vmatmul.bf16.gmra.mxu0 %v1149
          %v1163 = vpop.f32.mrf.mxu0
          %v1164 = vadd.f32 %v993, %v1163
          %v1165 = vpop.f32.mrf.mxu0
          %v1166 = vadd.f32 %v993, %v1165
          %1167 = vdwg.mxu0
          %v1168 = vsel %vm1017, %v1164, -inf
          %1169 = vmax.xlane.f32.xlu0 %v1168
          %v1170 = vpop.xlane.xlu0 %1169
          %v1171 = vsel %vm1017, %v1166, -inf
          %1172 = vmax.xlane.f32.xlu0 %v1171
          %v1173 = vpop.xlane.xlu0 %1172
          %v1174 = vsub.f32 %v1164, %v1170
          %v1175 = vsub.f32 %v1166, %v1173
          %v1176 = vpack.c.bf16 %v1174, %v1174
          %v1177 = vpack.c.bf16 %v1175, %v1175
          %v1178 = vunpack.c.l.bf16 %v1176
          %v1179 = vunpack.c.l.bf16 %v1177
          %v1180 = vmul.f32 %v1178, 1.442695
          %v1181 = vpow.pop %v1180
          %v1182 = vmul.f32 %v1179, 1.442695
          %v1183 = vpow.pop %v1182
          %v1184 = vpack.c.bf16 %v1181, %v1181
          %v1185 = vpack.c.bf16 %v1183, %v1183
          %v1186 = vunpack.c.l.bf16 %v1184
          %v1187 = vunpack.c.l.bf16 %v1185
          %v1188 = vsel %vm1017, %v1186, 0.0
          %1189 = vadd.xlane.f32.xlu0 %v1188
          %v1190 = vpop.xlane.xlu0 %1189
          %v1191 = vsel %vm1017, %v1187, 0.0
          %1192 = vadd.xlane.f32.xlu0 %v1191
          %v1193 = vpop.xlane.xlu0 %1192
          %v1194 = vrcp.pop %v1190
          %v1195 = vrcp.pop %v1193
          %v1196 = vmul.f32 %v1186, %v1194
          %v1197 = vmul.f32 %v1187, %v1195
          %v1198 = vpack.c.bf16 %v1197, %v1196
          %1199 = vrot.lane.b32.xlu0 %v991, 48
          %v1200 = vpop.permute.xlu0 %1199
          %v1203 = vsel %vm1017, %v1198, 0
          %1205 = vmatpush.bf16.msra.mxu0 0
          %1206 = vmatpush.bf16.msra.mxu0 0
          %1207 = vmatpush.bf16.msra.mxu0 0
          %1208 = vmatpush.bf16.msra.mxu0 0
          %1209 = vmatpush.bf16.msra.mxu0 0
          %1210 = vmatpush.bf16.msra.mxu0 0
          %1211 = vmatpush.bf16.msra.mxu0 0
          %1212 = vmatpush.bf16.msra.mxu0 %v1200
          %1213 = vmatmul.bf16.gmra.mxu0 %v1203
          %v1214 = vpop.f32.mrf.mxu0
          %v1215 = vadd.f32 0.0, %v1214
          %v1216 = vpop.f32.mrf.mxu0
          %v1217 = vadd.f32 0.0, %v1216
          %1218 = vdwg.mxu0
          %v1219 = vpack.c.bf16 %v970, %v970
          %1220 = vrot.lane.b32.xlu0 %v989, 104
          %v1221 = vpop.permute.xlu0 %1220
          %v1223 = vsel %vm995, %v1221, 0
          %v1226 = vsel %vm999, %v1219, 0
          %1228 = vmatpush.bf16.msra.mxu0 0
          %1229 = vmatpush.bf16.msra.mxu0 0
          %1230 = vmatpush.bf16.msra.mxu0 0
          %1231 = vmatpush.bf16.msra.mxu0 0
          %1232 = vmatpush.bf16.msra.mxu0 0
          %1233 = vmatpush.bf16.msra.mxu0 0
          %1234 = vmatpush.bf16.msra.mxu0 0
          %1235 = vmatpush.bf16.msra.mxu0 %v1226
          %1236 = vmatmul.bf16.gmra.mxu0 %v1223
          %v1237 = vpop.f32.mrf.mxu0
          %v1238 = vadd.f32 %v993, %v1237
          %v1239 = vpop.f32.mrf.mxu0
          %v1240 = vadd.f32 %v993, %v1239
          %1241 = vdwg.mxu0
          %v1242 = vsel %vm1017, %v1238, -inf
          %1243 = vmax.xlane.f32.xlu0 %v1242
          %v1244 = vpop.xlane.xlu0 %1243
          %v1245 = vsel %vm1017, %v1240, -inf
          %1246 = vmax.xlane.f32.xlu0 %v1245
          %v1247 = vpop.xlane.xlu0 %1246
          %v1248 = vsub.f32 %v1238, %v1244
          %v1249 = vsub.f32 %v1240, %v1247
          %v1250 = vpack.c.bf16 %v1248, %v1248
          %v1251 = vpack.c.bf16 %v1249, %v1249
          %v1252 = vunpack.c.l.bf16 %v1250
          %v1253 = vunpack.c.l.bf16 %v1251
          %v1254 = vmul.f32 %v1252, 1.442695
          %v1255 = vpow.pop %v1254
          %v1256 = vmul.f32 %v1253, 1.442695
          %v1257 = vpow.pop %v1256
          %v1258 = vpack.c.bf16 %v1255, %v1255
          %v1259 = vpack.c.bf16 %v1257, %v1257
          %v1260 = vunpack.c.l.bf16 %v1258
          %v1261 = vunpack.c.l.bf16 %v1259
          %v1262 = vsel %vm1017, %v1260, 0.0
          %1263 = vadd.xlane.f32.xlu0 %v1262
          %v1264 = vpop.xlane.xlu0 %1263
          %v1265 = vsel %vm1017, %v1261, 0.0
          %1266 = vadd.xlane.f32.xlu0 %v1265
          %v1267 = vpop.xlane.xlu0 %1266
          %v1268 = vrcp.pop %v1264
          %v1269 = vrcp.pop %v1267
          %v1270 = vmul.f32 %v1260, %v1268
          %v1271 = vmul.f32 %v1261, %v1269
          %v1272 = vpack.c.bf16 %v1271, %v1270
          %1273 = vrot.lane.b32.xlu0 %v991, 40
          %v1274 = vpop.permute.xlu0 %1273
          %v1277 = vsel %vm1017, %v1272, 0
          %1279 = vmatpush.bf16.msra.mxu0 0
          %1280 = vmatpush.bf16.msra.mxu0 0
          %1281 = vmatpush.bf16.msra.mxu0 0
          %1282 = vmatpush.bf16.msra.mxu0 0
          %1283 = vmatpush.bf16.msra.mxu0 0
          %1284 = vmatpush.bf16.msra.mxu0 0
          %1285 = vmatpush.bf16.msra.mxu0 0
          %1286 = vmatpush.bf16.msra.mxu0 %v1274
          %1287 = vmatmul.bf16.gmra.mxu0 %v1277
          %v1288 = vpop.f32.mrf.mxu0
          %v1289 = vadd.f32 0.0, %v1288
          %v1290 = vpop.f32.mrf.mxu0
          %v1291 = vadd.f32 0.0, %v1290
          %1292 = vdwg.mxu0
          %1295 = vrot.lane.b32.xlu0 %v1141, 8
          %v1296 = vpop.permute.xlu0 %1295
          %1297 = vrot.lane.b32.xlu0 %v1143, 8
          %v1298 = vpop.permute.xlu0 %1297
          %1303 = vrot.lane.b32.xlu0 %v1215, 16
          %v1304 = vpop.permute.xlu0 %1303
          %1305 = vrot.lane.b32.xlu0 %v1217, 16
          %v1306 = vpop.permute.xlu0 %1305
          %1311 = vrot.lane.b32.xlu0 %v1289, 24
          %v1312 = vpop.permute.xlu0 %1311
          %1313 = vrot.lane.b32.xlu0 %v1291, 24
          %v1314 = vpop.permute.xlu0 %1313
          %v1317 = vsel %vm995, %v1066, %v1296
          %v1318 = vsel %vm995, %v1068, %v1298
          %v1319 = vsel %vm1017, %v1317, %v1304
          %v1320 = vsel %vm1017, %v1318, %v1306
          %vm1321 = vcmask 195584
          %v1322 = vsel %vm1321, %v1319, %v1312
          %v1323 = vsel %vm1321, %v1320, %v1314
          %v1324 = vld [vmem:[%s807] sm:$0xf]
          %v1325 = vld [vmem:[%s807 + $0x4] sm:$0xf]
          %v1326 = vld [vmem:[%s807 + $0x8] sm:$0xf]
          %v1327 = vld [vmem:[%s807 + $0xc] sm:$0xf]
          %v1328 = vpack.c.bf16 %v1323, %v1322
          %v1333 = vunpack.c.l.b16 %v1324
          %v1334 = vunpack.c.l.b16 %v1325
          %v1335 = vunpack.c.l.b16 %v1326
          %v1336 = vunpack.c.l.b16 %v1327
          %v1337 = vpack.c.b16 %v1334, %v1333
          %v1338 = vpack.c.b16 %v1336, %v1335
          %v1342 = vsel %vm925, %v1328, 0
          %1344 = vmatpush.bf16.msra.mxu0 0
          %1345 = vmatpush.bf16.msra.mxu0 0
          %1346 = vmatpush.bf16.msra.mxu0 0
          %1347 = vmatpush.bf16.msra.mxu0 0
          %1348 = vmatpush.bf16.msra.mxu0 0
          %1349 = vmatpush.bf16.msra.mxu0 0
          %1350 = vmatpush.bf16.msra.mxu0 %v1338
          %1351 = vmatpush.bf16.msra.mxu0 %v1337
          %1352 = vmatmul.bf16.gmra.mxu0 %v1342
          %v1353 = vpop.f32.mrf.mxu0
          %v1354 = vadd.f32 0.0, %v1353
          %v1355 = vpop.f32.mrf.mxu0
          %v1356 = vadd.f32 0.0, %v1355
          %1357 = vdwg.mxu0
          %v1358 = vadd.f32 %v901, %v1354
          %v1359 = vadd.f32 %v902, %v1356
          %v1360 = vld [vmem:[%s810] sm:$0x1]
          %v1362 = vperm.slane %v1360, 0
          %v1364 = vadd.f32 %v1358, %v1362
          %v1365 = vadd.f32 %v1359, %v1362
          %v1366 = vld [vmem:[%s813] sm:$0x1]
          %v1367 = vld [vmem:[%s672] sm:$0x1]
          %v1368 = vsel %vm925, %v1364, 0.0
          %1369 = vadd.xlane.f32.xlu0 %v1368
          %v1370 = vpop.xlane.xlu0 %1369
          %v1371 = vsel %vm925, %v1365, 0.0
          %1372 = vadd.xlane.f32.xlu0 %v1371
          %v1373 = vpop.xlane.xlu0 %1372
          %v1374 = vrcp.pop 32.0
          %v1375 = vmul.f32 32.0, %v1374
          %v1376 = vsub.f32 1.0, %v1375
          %v1377 = vmul.f32 %v1374, %v1376
          %v1378 = vadd.f32 %v1374, %v1377
          %vm1379 = vweird.f32 %v1374
          %v1380 = vsel %vm1379, %v1374, %v1378
          %v1381 = vmul.f32 %v1370, %v1380
          %v1382 = vmul.f32 %v1373, %v1380
          %v1383 = vsub.f32 %v1364, %v1381
          %v1384 = vsub.f32 %v1365, %v1382
          %v1385 = vmul.f32 %v1383, %v1383
          %v1386 = vmul.f32 %v1384, %v1384
          %v1387 = vsel %vm925, %v1385, 0.0
          %1388 = vadd.xlane.f32.xlu0 %v1387
          %v1389 = vpop.xlane.xlu0 %1388
          %v1390 = vsel %vm925, %v1386, 0.0
          %1391 = vadd.xlane.f32.xlu0 %v1390
          %v1392 = vpop.xlane.xlu0 %1391
          %v1393 = vmul.f32 %v1389, %v1380
          %v1394 = vmul.f32 %v1392, %v1380
          %v1395 = vadd.f32 %v1393, 1e-12
          %v1396 = vadd.f32 %v1394, 1e-12
          %v1397 = vrsqrt.pop %v1395
          %v1398 = vmul.f32 %v1397, %v1395
          %v1399 = vmul.f32 %v1398, %v1397
          %v1400 = vmul.f32 0.5, %v1399
          %v1401 = vsub.f32 1.5, %v1400
          %v1402 = vmul.f32 %v1397, %v1401
          %vm1403 = vweird.f32 %v1395
          %vm1404 = vweird.f32 %v1397
          %vm1405 = vmor %vm1403, %vm1404
          %v1406 = vsel %vm1405, %v1397, %v1402
          %v1407 = vrsqrt.pop %v1396
          %v1408 = vmul.f32 %v1407, %v1396
          %v1409 = vmul.f32 %v1408, %v1407
          %v1410 = vmul.f32 0.5, %v1409
          %v1411 = vsub.f32 1.5, %v1410
          %v1412 = vmul.f32 %v1407, %v1411
          %vm1413 = vweird.f32 %v1396
          %vm1414 = vweird.f32 %v1407
          %vm1415 = vmor %vm1413, %vm1414
          %v1416 = vsel %vm1415, %v1407, %v1412
          %v1417 = vmul.f32 %v1383, %v1406
          %v1418 = vmul.f32 %v1384, %v1416
          %v1420 = vperm.slane %v1366, 0
          %v1422 = vmul.f32 %v1417, %v1420
          %v1423 = vmul.f32 %v1418, %v1420
          %v1425 = vperm.slane %v1367, 0
          %v1427 = vadd.f32 %v1422, %v1425
          %v1428 = vadd.f32 %v1423, %v1425
          %v1429 = vld [vmem:[%s682] sm:$0xf]
          %v1430 = vld [vmem:[%s682 + $0x4] sm:$0xf]
          %v1431 = vld [vmem:[%s682 + $0x8] sm:$0xf]
          %v1432 = vld [vmem:[%s682 + $0xc] sm:$0xf]
          %v1433 = vpack.c.bf16 %v1428, %v1427
          %v1434 = vld [vmem:[%s816] sm:$0x1]
          %v1436 = vperm.slane %v1434, 0
          %v1442 = vunpack.c.l.b16 %v1429
          %v1443 = vunpack.c.l.b16 %v1430
          %v1444 = vunpack.c.l.b16 %v1431
          %v1445 = vunpack.c.l.b16 %v1432
          %v1446 = vpack.c.b16 %v1443, %v1442
          %v1447 = vpack.c.b16 %v1445, %v1444
          %v1451 = vsel %vm925, %v1433, 0
          %1453 = vmatpush.bf16.msra.mxu0 0
          %1454 = vmatpush.bf16.msra.mxu0 0
          %1455 = vmatpush.bf16.msra.mxu0 0
          %1456 = vmatpush.bf16.msra.mxu0 0
          %1457 = vmatpush.bf16.msra.mxu0 0
          %1458 = vmatpush.bf16.msra.mxu0 0
          %1459 = vmatpush.bf16.msra.mxu0 %v1447
          %1460 = vmatpush.bf16.msra.mxu0 %v1446
          %1461 = vmatmul.bf16.gmra.mxu0 %v1451
          %v1462 = vpop.f32.mrf.mxu0
          %v1463 = vadd.f32 %v1436, %v1462
          %v1464 = vpop.f32.mrf.mxu0
          %v1465 = vadd.f32 %v1436, %v1464
          %1466 = vdwg.mxu0
          %v1467 = vmul.f32 %v1463, 0.044715
          %v1468 = vmul.f32 %v1465, 0.044715
          %v1469 = vmul.f32 %v1467, %v1463
          %v1470 = vmul.f32 %v1468, %v1465
          %v1471 = vmul.f32 %v1469, %v1463
          %v1472 = vmul.f32 %v1470, %v1465
          %v1473 = vadd.f32 %v1463, %v1471
          %v1474 = vadd.f32 %v1465, %v1472
          %v1475 = vmul.f32 %v1473, 0.7978846
          %v1476 = vmul.f32 %v1474, 0.7978846
          %v1477 = vpack.c.bf16 %v1475, %v1475
          %v1478 = vpack.c.bf16 %v1476, %v1476
          %v1479 = vunpack.c.l.bf16 %v1477
          %v1480 = vunpack.c.l.bf16 %v1478
          %v1481 = vtanh.pop %v1479
          %v1482 = vtanh.pop %v1480
          %v1483 = vpack.c.bf16 %v1481, %v1481
          %v1484 = vpack.c.bf16 %v1482, %v1482
          %v1485 = vunpack.c.l.bf16 %v1483
          %v1486 = vunpack.c.l.bf16 %v1484
          %v1487 = vmul.f32 %v1463, 0.5
          %v1488 = vmul.f32 %v1465, 0.5
          %v1489 = vadd.f32 %v1485, 1.0
          %v1490 = vadd.f32 %v1486, 1.0
          %v1491 = vmul.f32 %v1487, %v1489
          %v1492 = vmul.f32 %v1488, %v1490
          %v1493 = vld [vmem:[%s821] sm:$0xf]
          %v1494 = vld [vmem:[%s821 + $0x4] sm:$0xf]
          %v1495 = vld [vmem:[%s821 + $0x8] sm:$0xf]
          %v1496 = vld [vmem:[%s821 + $0xc] sm:$0xf]
          %v1497 = vld [vmem:[%s821 + $0x10] sm:$0xf]
          %v1498 = vld [vmem:[%s821 + $0x14] sm:$0xf]
          %v1499 = vld [vmem:[%s821 + $0x18] sm:$0xf]
          %v1500 = vld [vmem:[%s821 + $0x1c] sm:$0xf]
          %v1501 = vpack.c.bf16 %v1492, %v1491
          %v1510 = vunpack.c.l.b16 %v1493
          %v1511 = vunpack.c.l.b16 %v1494
          %v1512 = vunpack.c.l.b16 %v1495
          %v1513 = vunpack.c.l.b16 %v1496
          %v1514 = vunpack.c.l.b16 %v1497
          %v1515 = vunpack.c.l.b16 %v1498
          %v1516 = vunpack.c.l.b16 %v1499
          %v1517 = vunpack.c.l.b16 %v1500
          %v1518 = vpack.c.b16 %v1511, %v1510
          %v1519 = vpack.c.b16 %v1513, %v1512
          %v1520 = vpack.c.b16 %v1515, %v1514
          %v1521 = vpack.c.b16 %v1517, %v1516
          %vm1526 = vcmask 523264
          %v1528 = vsel %vm1526, %v1501, 0
          %1530 = vmatpush.bf16.msra.mxu0 0
          %1531 = vmatpush.bf16.msra.mxu0 0
          %1532 = vmatpush.bf16.msra.mxu0 0
          %1533 = vmatpush.bf16.msra.mxu0 0
          %1534 = vmatpush.bf16.msra.mxu0 %v1521
          %1535 = vmatpush.bf16.msra.mxu0 %v1520
          %1536 = vmatpush.bf16.msra.mxu0 %v1519
          %1537 = vmatpush.bf16.msra.mxu0 %v1518
          %1538 = vmatmul.bf16.gmra.mxu0 %v1528
          %v1539 = vpop.f32.mrf.mxu0
          %v1540 = vadd.f32 0.0, %v1539
          %v1541 = vpop.f32.mrf.mxu0
          %v1542 = vadd.f32 0.0, %v1541
          %1543 = vdwg.mxu0
          %v1544 = vadd.f32 %v1427, %v1540
          %v1545 = vadd.f32 %v1428, %v1542
          %v1546 = vld [vmem:[%s824] sm:$0x1]
          %v1548 = vperm.slane %v1546, 0
          %v1550 = vadd.f32 %v1544, %v1548
          %v1551 = vadd.f32 %v1545, %v1548
          %v1552 = vld [vmem:[%s827] sm:$0x1]
          %v1553 = vld [vmem:[%s691] sm:$0x1]
          %v1554 = vsel %vm925, %v1550, 0.0
          %1555 = vadd.xlane.f32.xlu0 %v1554
          %v1556 = vpop.xlane.xlu0 %1555
          %v1557 = vsel %vm925, %v1551, 0.0
          %1558 = vadd.xlane.f32.xlu0 %v1557
          %v1559 = vpop.xlane.xlu0 %1558
          %v1560 = vmul.f32 %v1556, %v1380
          %v1561 = vmul.f32 %v1559, %v1380
          %v1562 = vsub.f32 %v1550, %v1560
          %v1563 = vsub.f32 %v1551, %v1561
          %v1564 = vmul.f32 %v1562, %v1562
          %v1565 = vmul.f32 %v1563, %v1563
          %v1566 = vsel %vm925, %v1564, 0.0
          %1567 = vadd.xlane.f32.xlu0 %v1566
          %v1568 = vpop.xlane.xlu0 %1567
          %v1569 = vsel %vm925, %v1565, 0.0
          %1570 = vadd.xlane.f32.xlu0 %v1569
          %v1571 = vpop.xlane.xlu0 %1570
          %v1572 = vmul.f32 %v1568, %v1380
          %v1573 = vmul.f32 %v1571, %v1380
          %v1574 = vadd.f32 %v1572, 1e-12
          %v1575 = vadd.f32 %v1573, 1e-12
          %v1576 = vrsqrt.pop %v1574
          %v1577 = vmul.f32 %v1576, %v1574
          %v1578 = vmul.f32 %v1577, %v1576
          %v1579 = vmul.f32 0.5, %v1578
          %v1580 = vsub.f32 1.5, %v1579
          %v1581 = vmul.f32 %v1576, %v1580
          %vm1582 = vweird.f32 %v1574
          %vm1583 = vweird.f32 %v1576
          %vm1584 = vmor %vm1582, %vm1583
          %v1585 = vsel %vm1584, %v1576, %v1581
          %v1586 = vrsqrt.pop %v1575
          %v1587 = vmul.f32 %v1586, %v1575
          %v1588 = vmul.f32 %v1587, %v1586
          %v1589 = vmul.f32 0.5, %v1588
          %v1590 = vsub.f32 1.5, %v1589
          %v1591 = vmul.f32 %v1586, %v1590
          %vm1592 = vweird.f32 %v1575
          %vm1593 = vweird.f32 %v1586
          %vm1594 = vmor %vm1592, %vm1593
          %v1595 = vsel %vm1594, %v1586, %v1591
          %v1596 = vmul.f32 %v1562, %v1585
          %v1597 = vmul.f32 %v1563, %v1595
          %v1599 = vperm.slane %v1552, 0
          %v1601 = vmul.f32 %v1596, %v1599
          %v1602 = vmul.f32 %v1597, %v1599
          %v1604 = vperm.slane %v1553, 0
          %v1606 = vadd.f32 %v1601, %v1604
          %v1607 = vadd.f32 %v1602, %v1604
          %1608 = vst.msk [vmem:[#allocation2] sm:$0xff] %vm925, %v1606
          %1609 = vst.msk [vmem:[#allocation2 + $0x8] sm:$0xff] %vm925, %v1607
        $region112: #{tpu_custom_call.1} parent=83 // pred_fallthru
          _
        %p1610 = scmp.eq.s32.totalorder %s39, 1
        // Predicated region
        $region113: #{tpu_custom_call.1} parent=83 // pred_check
          %p1611 = pneg %p1610
        $region114: #{tpu_custom_call.1} parent=83 // pred_check_branch
          %1613 = sbr.rel (%p1611) target = $region116
        $region115: #{tpu_custom_call.1} parent=83 // pred_region
          %vm1614 = vcmask 64512
          %v1615 = vsel %vm1614, %v939, 0
          %1617 = vmatpush.msra.mxu0 0.0
          %1618 = vmatpush.msra.mxu0 0.0
          %1619 = vmatpush.msra.mxu0 0.0
          %1620 = vmatpush.msra.mxu0 0.0
          %1621 = vmatpush.msra.mxu0 0.0
          %1622 = vmatpush.msra.mxu0 0.0
          %1623 = vmatpush.msra.mxu0 0.0
          %1624 = vmatpush.msra.mxu0 0.0
          %1625 = vmatpush.msra.mxu0 0.0
          %1626 = vmatpush.msra.mxu0 0.0
          %1627 = vmatpush.msra.mxu0 0.0
          %1628 = vmatpush.msra.mxu0 0.0
          %1629 = vmatpush.msra.mxu0 0.0
          %1630 = vmatpush.msra.mxu0 0.0
          %1631 = vmatpush.msra.mxu0 0.0
          %1632 = vmatpush.msra.mxu0 %v967
          %1633 = vmatmul.f32.gmra.mxu0 %v1615
          %v1634 = vpop.f32.mrf.mxu0
          %v1635 = vadd.f32 0.0, %v1634
          %1636 = vdwg.mxu0
          %v1637 = vmul.f32 %v1635, 0.35355338
          %v1638 = vadd.f32 %v1637, %v903
          %vm1639 = vcmask 122880
          %v1640 = vsel %vm1639, %v1638, -inf
          %1641 = vmax.xlane.f32.xlu0 %v1640
          %v1642 = vpop.xlane.xlu0 %1641
          %v1643 = vsub.f32 %v1638, %v1642
          %v1644 = vmul.f32 %v1643, 1.442695
          %v1645 = vpow.pop %v1644
          %v1646 = vsel %vm1639, %v1645, 0.0
          %1647 = vadd.xlane.f32.xlu0 %v1646
          %v1648 = vpop.xlane.xlu0 %1647
          %v1649 = vrcp.pop %v1648
          %v1650 = vmul.f32 %v1648, %v1649
          %v1651 = vsub.f32 1.0, %v1650
          %v1652 = vmul.f32 %v1649, %v1651
          %v1653 = vadd.f32 %v1649, %v1652
          %vm1654 = vweird.f32 %v1648
          %vm1655 = vweird.f32 %v1649
          %vm1656 = vmor %vm1654, %vm1655
          %v1657 = vsel %vm1656, %v1649, %v1653
          %v1658 = vand.u32 2147483647, %v1648
          %vm1659 = vcmp.eq.f32.partialorder %v1658, 8.507059e+37
          %v1660 = vand.u32 %v1648, 2147483648
          %v1661 = vor.u32 1.1754944e-38, %v1660
          %v1662 = vsel %vm1659, %v1661, %v1657
          %v1663 = vmul.f32 %v1645, %v1662
          %v1664 = vadd.f32 %v1663, 0.0
          %1665 = vrot.lane.b32.xlu0 %v939, 120
          %v1666 = vpop.permute.xlu0 %1665
          %v1667 = vsel %vm1614, %v1666, 0
          %1669 = vmatpush.msra.mxu0 0.0
          %1670 = vmatpush.msra.mxu0 0.0
          %1671 = vmatpush.msra.mxu0 0.0
          %1672 = vmatpush.msra.mxu0 0.0
          %1673 = vmatpush.msra.mxu0 0.0
          %1674 = vmatpush.msra.mxu0 0.0
          %1675 = vmatpush.msra.mxu0 0.0
          %1676 = vmatpush.msra.mxu0 0.0
          %1677 = vmatpush.msra.mxu0 0.0
          %1678 = vmatpush.msra.mxu0 0.0
          %1679 = vmatpush.msra.mxu0 0.0
          %1680 = vmatpush.msra.mxu0 0.0
          %1681 = vmatpush.msra.mxu0 0.0
          %1682 = vmatpush.msra.mxu0 0.0
          %1683 = vmatpush.msra.mxu0 0.0
          %1684 = vmatpush.msra.mxu0 %v968
          %1685 = vmatmul.f32.gmra.mxu0 %v1667
          %v1686 = vpop.f32.mrf.mxu0
          %v1687 = vadd.f32 0.0, %v1686
          %1688 = vdwg.mxu0
          %v1689 = vmul.f32 %v1687, 0.35355338
          %v1690 = vadd.f32 %v1689, %v903
          %v1691 = vsel %vm1639, %v1690, -inf
          %1692 = vmax.xlane.f32.xlu0 %v1691
          %v1693 = vpop.xlane.xlu0 %1692
          %v1694 = vsub.f32 %v1690, %v1693
          %v1695 = vmul.f32 %v1694, 1.442695
          %v1696 = vpow.pop %v1695
          %v1697 = vsel %vm1639, %v1696, 0.0
          %1698 = vadd.xlane.f32.xlu0 %v1697
          %v1699 = vpop.xlane.xlu0 %1698
          %v1700 = vrcp.pop %v1699
          %v1701 = vmul.f32 %v1699, %v1700
          %v1702 = vsub.f32 1.0, %v1701
          %v1703 = vmul.f32 %v1700, %v1702
          %v1704 = vadd.f32 %v1700, %v1703
          %vm1705 = vweird.f32 %v1699
          %vm1706 = vweird.f32 %v1700
          %vm1707 = vmor %vm1705, %vm1706
          %v1708 = vsel %vm1707, %v1700, %v1704
          %v1709 = vand.u32 2147483647, %v1699
          %vm1710 = vcmp.eq.f32.partialorder %v1709, 8.507059e+37
          %v1711 = vand.u32 %v1699, 2147483648
          %v1712 = vor.u32 1.1754944e-38, %v1711
          %v1713 = vsel %vm1710, %v1712, %v1708
          %v1714 = vmul.f32 %v1696, %v1713
          %v1715 = vadd.f32 %v1664, %v1714
          %1716 = vrot.lane.b32.xlu0 %v939, 112
          %v1717 = vpop.permute.xlu0 %1716
          %v1718 = vsel %vm1614, %v1717, 0
          %1720 = vmatpush.msra.mxu0 0.0
          %1721 = vmatpush.msra.mxu0 0.0
          %1722 = vmatpush.msra.mxu0 0.0
          %1723 = vmatpush.msra.mxu0 0.0
          %1724 = vmatpush.msra.mxu0 0.0
          %1725 = vmatpush.msra.mxu0 0.0
          %1726 = vmatpush.msra.mxu0 0.0
          %1727 = vmatpush.msra.mxu0 0.0
          %1728 = vmatpush.msra.mxu0 0.0
          %1729 = vmatpush.msra.mxu0 0.0
          %1730 = vmatpush.msra.mxu0 0.0
          %1731 = vmatpush.msra.mxu0 0.0
          %1732 = vmatpush.msra.mxu0 0.0
          %1733 = vmatpush.msra.mxu0 0.0
          %1734 = vmatpush.msra.mxu0 0.0
          %1735 = vmatpush.msra.mxu0 %v969
          %1736 = vmatmul.f32.gmra.mxu0 %v1718
          %v1737 = vpop.f32.mrf.mxu0
          %v1738 = vadd.f32 0.0, %v1737
          %1739 = vdwg.mxu0
          %v1740 = vmul.f32 %v1738, 0.35355338
          %v1741 = vadd.f32 %v1740, %v903
          %v1742 = vsel %vm1639, %v1741, -inf
          %1743 = vmax.xlane.f32.xlu0 %v1742
          %v1744 = vpop.xlane.xlu0 %1743
          %v1745 = vsub.f32 %v1741, %v1744
          %v1746 = vmul.f32 %v1745, 1.442695
          %v1747 = vpow.pop %v1746
          %v1748 = vsel %vm1639, %v1747, 0.0
          %1749 = vadd.xlane.f32.xlu0 %v1748
          %v1750 = vpop.xlane.xlu0 %1749
          %v1751 = vrcp.pop %v1750
          %v1752 = vmul.f32 %v1750, %v1751
          %v1753 = vsub.f32 1.0, %v1752
          %v1754 = vmul.f32 %v1751, %v1753
          %v1755 = vadd.f32 %v1751, %v1754
          %vm1756 = vweird.f32 %v1750
          %vm1757 = vweird.f32 %v1751
          %vm1758 = vmor %vm1756, %vm1757
          %v1759 = vsel %vm1758, %v1751, %v1755
          %v1760 = vand.u32 2147483647, %v1750
          %vm1761 = vcmp.eq.f32.partialorder %v1760, 8.507059e+37
          %v1762 = vand.u32 %v1750, 2147483648
          %v1763 = vor.u32 1.1754944e-38, %v1762
          %v1764 = vsel %vm1761, %v1763, %v1759
          %v1765 = vmul.f32 %v1747, %v1764
          %v1766 = vadd.f32 %v1715, %v1765
          %1767 = vrot.lane.b32.xlu0 %v939, 104
          %v1768 = vpop.permute.xlu0 %1767
          %v1769 = vsel %vm1614, %v1768, 0
          %1771 = vmatpush.msra.mxu0 0.0
          %1772 = vmatpush.msra.mxu0 0.0
          %1773 = vmatpush.msra.mxu0 0.0
          %1774 = vmatpush.msra.mxu0 0.0
          %1775 = vmatpush.msra.mxu0 0.0
          %1776 = vmatpush.msra.mxu0 0.0
          %1777 = vmatpush.msra.mxu0 0.0
          %1778 = vmatpush.msra.mxu0 0.0
          %1779 = vmatpush.msra.mxu0 0.0
          %1780 = vmatpush.msra.mxu0 0.0
          %1781 = vmatpush.msra.mxu0 0.0
          %1782 = vmatpush.msra.mxu0 0.0
          %1783 = vmatpush.msra.mxu0 0.0
          %1784 = vmatpush.msra.mxu0 0.0
          %1785 = vmatpush.msra.mxu0 0.0
          %1786 = vmatpush.msra.mxu0 %v970
          %1787 = vmatmul.f32.gmra.mxu0 %v1769
          %v1788 = vpop.f32.mrf.mxu0
          %v1789 = vadd.f32 0.0, %v1788
          %1790 = vdwg.mxu0
          %v1791 = vmul.f32 %v1789, 0.35355338
          %v1792 = vadd.f32 %v1791, %v903
          %v1793 = vsel %vm1639, %v1792, -inf
          %1794 = vmax.xlane.f32.xlu0 %v1793
          %v1795 = vpop.xlane.xlu0 %1794
          %v1796 = vsub.f32 %v1792, %v1795
          %v1797 = vmul.f32 %v1796, 1.442695
          %v1798 = vpow.pop %v1797
          %v1799 = vsel %vm1639, %v1798, 0.0
          %1800 = vadd.xlane.f32.xlu0 %v1799
          %v1801 = vpop.xlane.xlu0 %1800
          %v1802 = vrcp.pop %v1801
          %v1803 = vmul.f32 %v1801, %v1802
          %v1804 = vsub.f32 1.0, %v1803
          %v1805 = vmul.f32 %v1802, %v1804
          %v1806 = vadd.f32 %v1802, %v1805
          %vm1807 = vweird.f32 %v1801
          %vm1808 = vweird.f32 %v1802
          %vm1809 = vmor %vm1807, %vm1808
          %v1810 = vsel %vm1809, %v1802, %v1806
          %v1811 = vand.u32 2147483647, %v1801
          %vm1812 = vcmp.eq.f32.partialorder %v1811, 8.507059e+37
          %v1813 = vand.u32 %v1801, 2147483648
          %v1814 = vor.u32 1.1754944e-38, %v1813
          %v1815 = vsel %vm1812, %v1814, %v1810
          %v1816 = vmul.f32 %v1798, %v1815
          %v1817 = vadd.f32 %v1766, %v1816
          %1818 = vst.msk [vmem:[%s789] sm:$0x1] %vm1639, %v1817
        $region116: #{tpu_custom_call.1} parent=83 // pred_fallthru
          _
        %s1819 = sand.u32 %s460, 1
        %s1820 = scalar_lea.sflag [#allocation5], %s1819
        %s1821 = sand.u32 %s460, 1
        %s1822 = scalar_lea.vmem [#allocation11], %s1821
        // Predicated region
        $region117: #{tpu_custom_call.1} parent=83 // pred_check
          %p1823 = pneg %p470
        $region118: #{tpu_custom_call.1} parent=83 // pred_check_branch
          %1825 = sbr.rel (%p1823) target = $region120
        $region119: #{tpu_custom_call.1} parent=83 // pred_region
          %1827 = vsyncadd %s1820, 0
          %s1828 = scalar_lea.hbm %s16, %s38
          %s1830 = sshll.u32 %s1822, 4
          %s1831 = int_to_ptr.vmem [resolvable:$true] %s1830
          %s1832 = sshll.u32 %s1828, 4
          %s1833 = int_to_ptr.hbm [resolvable:$true] %s1832
          %1835 = dma.vmem_to_hbm [thread:$0]  %s1831, 16, %s1833, %s1820
        $region120: #{tpu_custom_call.1} parent=83 // pred_fallthru
          _
      $region84: #{tpu_custom_call.1} parent=5 // pred_fallthru
        _
      %p1836 = scmp.le.s32.totalorder 2, %s29
      // Predicated region
      $region121: #{tpu_custom_call.1} parent=5 // pred_check
        %p1837 = pneg %p1836
      $region122: #{tpu_custom_call.1} parent=5 // pred_check_branch
        %1839 = sbr.rel (%p1837) target = $region124
      $region123: #{tpu_custom_call.1} parent=5 // pred_region
        %s1840 = ssub.s32 %s29, 2
        // Predicated region
        $region125: #{tpu_custom_call.1} parent=123 // pred_check
          %p1841 = pneg %p476
        $region126: #{tpu_custom_call.1} parent=123 // pred_check_branch
          %1843 = sbr.rel (%p1841) target = $region128
        $region127: #{tpu_custom_call.1} parent=123 // pred_region
          %s1844 = sand.u32 %s461, 1
          %s1845 = scalar_lea.sflag [#allocation5], %s1844
          %s1846 = sand.u32 %s461, 1
          %s1847 = scalar_lea.vmem [#allocation11], %s1846
          %1849 = dma.done %s1845, 16
        $region128: #{tpu_custom_call.1} parent=123 // pred_fallthru
          _
      $region124: #{tpu_custom_call.1} parent=5 // pred_fallthru
        _
    $region6: #{tpu_custom_call.1} parent=1 // loop_footer
      %s33 = sadd.s32 1, %s29
    $region7: #{tpu_custom_call.1} parent=1 // loop_footer_branch
      %28 = sbr.rel target = $region3
    $region8: #{tpu_custom_call.1} parent=1 // loop_exit
      _
    %1850 = vsyncpa [#allocation4], 1
    %s1851 = scalar_lea.sflag [#allocation4], 1
    %1852 = vsyncpa %s1851, 1
    %1853 = vsyncpa [#allocation7], 1
    %1854 = vsyncpa [#allocation5], 1
    %s1855 = scalar_lea.sflag [#allocation5], 1
    %1856 = vsyncpa %s1855, 1

</llo_original>
